<compile_context>
chip_gen: v7x
topology: tpu7x:2x2x1
jax: 0.10.0
libtpu: 0.0.40
codegen_flags: <defaults>
</compile_context>

<pallas_src>
import functools

import jax
import jax.numpy as jnp
from jax.experimental import pallas as pl
from jax.experimental.pallas import tpu as pltpu

LANE = 128


def _ceil_to(v, m):
    return (v + m - 1) // m * m


def _im2col_row(dst_ref, src, r0, zrow, *, K, dilation, pad, L):
    """Write K tap-shifted copies of one batch row `src` (L, C) into dst_ref
    rows [r0, r0+L), column slab k = [k*C, (k+1)*C).

    Slab k at output row t holds src[t + k*dilation - pad] (symmetric 'same'
    padding -> zero where the shifted index falls outside [0, L)).  Every
    element of the row range is overwritten, so the scratch never needs a
    global zero fill; only the small halo edges get zero stores (sliced from
    the hoisted `zrow` constant).  All offsets are static Python ints.
    """
    C = src.shape[-1]
    for k in range(K):
        s = k * dilation
        c0, c1 = k * C, (k + 1) * C
        lo = min(max(0, pad - s), L)        # rows [0, lo)  of this slab are zero
        hi = max(min(L, L + pad - s), 0)    # rows [hi, L)  of this slab are zero
        if hi <= lo:
            dst_ref[r0:r0 + L, c0:c1] = zrow
            continue
        if lo > 0:
            dst_ref[r0:r0 + lo, c0:c1] = zrow[:lo]
        if hi < L:
            dst_ref[r0 + hi:r0 + L, c0:c1] = zrow[:L - hi]
        dst_ref[r0 + lo:r0 + hi, c0:c1] = src[lo + s - pad:hi + s - pad, :]


def temporal_block_kernel(*args, K, dilation, pad, L, NB, Cin, Cout,
                          has_downsample):
    """One grid step processes NB batch rows, flattened into the matmul M dim.

    x_ref   : (NB, L, Cin)    bf16 input block (also the residual source)
    w1_ref  : (K*Cin, Cout)   bf16 fused conv1 weights
    w2_ref  : (K*Cout, Cout)  bf16 fused conv2 weights
    wd_ref  : (Cin, Cout)     bf16 1x1 downsample weights (optional)
    s*/b*   : (1, Cout)       f32 folded BatchNorm scale / shift
    out_ref : (NB, L, Cout)   output block
    im1_ref : (NB*L, K*Cin)   bf16 VMEM scratch (conv1 im2col operand)
    im2_ref : (NB*L, K*Cout)  bf16 VMEM scratch (conv2 im2col operand)
    Cin/Cout here are the 128-lane padded channel counts.
    """
    if has_downsample:
        (x_ref, w1_ref, s1_ref, b1_ref, w2_ref, s2_ref, b2_ref,
         wd_ref, sd_ref, bd_ref, out_ref, im1_ref, im2_ref) = args
    else:
        (x_ref, w1_ref, s1_ref, b1_ref, w2_ref, s2_ref, b2_ref,
         out_ref, im1_ref, im2_ref) = args
        wd_ref = sd_ref = bd_ref = None

    M = NB * L

    # BN scale/shift loads hoisted: JAX does not CSE broadcast_in_dim, so emit
    # each (1,C) load / broadcast exactly once per grid step.
    s1 = s1_ref[...]
    b1 = b1_ref[...]
    s2 = s2_ref[...]
    b2 = b2_ref[...]

    # ---- conv1: build the (M, K*Cin) im2col operand directly in bf16 ----
    z_in = jnp.zeros((L, Cin), jnp.bfloat16)
    for b in range(NB):
        _im2col_row(im1_ref, x_ref[b], b * L, z_in,
                    K=K, dilation=dilation, pad=pad, L=L)
    h = jnp.dot(im1_ref[...], w1_ref[...],
                preferred_element_type=jnp.float32)          # (M, Cout) f32

    # ---- bn1 + relu (dropout1 == identity in eval mode) ----
    h = jnp.maximum(h * s1 + b1, 0.0)
    h_bf = h.astype(jnp.bfloat16)                            # single cast

    # ---- conv2: same fused deep-matmul scheme on the activation ----
    z_out = jnp.zeros((L, Cout), jnp.bfloat16)
    for b in range(NB):
        _im2col_row(im2_ref, h_bf[b * L:(b + 1) * L, :], b * L, z_out,
                    K=K, dilation=dilation, pad=pad, L=L)
    acc = jnp.dot(im2_ref[...], w2_ref[...],
                  preferred_element_type=jnp.float32)        # (M, Cout) f32

    # ---- bn2 ----
    acc = acc * s2 + b2

    # ---- residual: reuse the resident input block (single input stream) ----
    x_flat = x_ref[...].reshape(M, Cin)                      # bf16
    if has_downsample:
        res = jnp.dot(x_flat, wd_ref[...], preferred_element_type=jnp.float32)
        res = res * sd_ref[...] + bd_ref[...]
    else:
        # Cin == Cout; residual add uses the bf16 MXU operand of x (documented
        # bf16 rounding vs the f32 PyTorch module).
        res = x_flat.astype(jnp.float32)

    # ---- add + relu (dropout2 == identity in eval mode) ----
    out = jnp.maximum(acc + res, 0.0)
    out_ref[...] = out.reshape(NB, L, Cout).astype(out_ref.dtype)


def _bn_fold_pad(gamma, beta, mean, var, cout_p, eps=1e-5):
    scale = gamma / jnp.sqrt(var + eps)
    shift = beta - mean * scale
    scale = jnp.pad(scale, (0, cout_p - scale.shape[0]))
    shift = jnp.pad(shift, (0, cout_p - shift.shape[0]))
    return (scale.reshape(1, -1).astype(jnp.float32),
            shift.reshape(1, -1).astype(jnp.float32))


def temporal_block_forward(x_ncl, params, *, kernel_size=7, dilation=1,
                           batch_block=1, out_dtype=jnp.float32):
    """x_ncl: (N, Cin, L) float32 (PyTorch NCL). Returns (N, Cout, L)."""
    N, Cin, L = x_ncl.shape
    Cout = params["w1"].shape[0]
    K = kernel_size
    # Symmetric 'same' padding only preserves length L when (K-1)*dilation is
    # even (otherwise the PyTorch module emits length L-1); fail loudly.
    assert ((K - 1) * dilation) % 2 == 0, \
        "(kernel_size-1)*dilation must be even for length-preserving padding"
    pad = (K - 1) * dilation // 2
    has_downsample = params.get("wd") is not None
    if not has_downsample:
        assert Cin == Cout, "identity residual requires Cin == Cout"
    NB = batch_block
    assert N % NB == 0, "batch_block must divide the batch size"

    # Pad channels to 128-lane multiples: lane-dense tap slabs / output stores,
    # and the MXU N dim is never sub-128.
    Cin_p = _ceil_to(Cin, LANE)
    Cout_p = _ceil_to(Cout, LANE)

    # Glue: layout, zero channel padding, bf16 MXU operands, BN folding.
    x_nlc = jnp.transpose(x_ncl, (0, 2, 1))                       # (N, L, Cin)
    x_nlc = jnp.pad(x_nlc, ((0, 0), (0, 0), (0, Cin_p - Cin)))
    x_nlc = x_nlc.astype(jnp.bfloat16)                            # (N, L, Cin_p)

    def fuse_w(w, cin, cin_p):                                    # (Cout,cin,K)
        k = w.shape[2]
        wt = jnp.transpose(w, (2, 1, 0))                          # (K,cin,Cout)
        wt = jnp.pad(wt, ((0, 0), (0, cin_p - cin), (0, Cout_p - Cout)))
        return wt.reshape(k * cin_p, Cout_p).astype(jnp.bfloat16)

    w1 = fuse_w(params["w1"], Cin, Cin_p)                         # (K*Cin_p, Cout_p)
    w2 = fuse_w(params["w2"], Cout, Cout_p)                       # (K*Cout_p, Cout_p)
    s1, b1 = _bn_fold_pad(*params["bn1"], Cout_p)
    s2, b2 = _bn_fold_pad(*params["bn2"], Cout_p)

    inputs = [x_nlc, w1, s1, b1, w2, s2, b2]
    in_specs = [
        pl.BlockSpec((NB, L, Cin_p), lambda n: (n, 0, 0)),        # x block
        pl.BlockSpec((K * Cin_p, Cout_p), lambda n: (0, 0)),      # w1 (fused)
        pl.BlockSpec((1, Cout_p), lambda n: (0, 0)),              # s1
        pl.BlockSpec((1, Cout_p), lambda n: (0, 0)),              # b1
        pl.BlockSpec((K * Cout_p, Cout_p), lambda n: (0, 0)),     # w2 (fused)
        pl.BlockSpec((1, Cout_p), lambda n: (0, 0)),              # s2
        pl.BlockSpec((1, Cout_p), lambda n: (0, 0)),              # b2
    ]
    if has_downsample:
        wd = jnp.transpose(params["wd"][:, :, 0], (1, 0))         # (Cin, Cout)
        wd = jnp.pad(wd, ((0, Cin_p - Cin), (0, Cout_p - Cout)))
        wd = wd.astype(jnp.bfloat16)
        sd, bd = _bn_fold_pad(*params["bnd"], Cout_p)
        inputs += [wd, sd, bd]
        in_specs += [
            pl.BlockSpec((Cin_p, Cout_p), lambda n: (0, 0)),      # wd
            pl.BlockSpec((1, Cout_p), lambda n: (0, 0)),          # sd
            pl.BlockSpec((1, Cout_p), lambda n: (0, 0)),          # bd
        ]

    kernel = functools.partial(
        temporal_block_kernel,
        K=K, dilation=dilation, pad=pad, L=L, NB=NB,
        Cin=Cin_p, Cout=Cout_p, has_downsample=has_downsample)

    # Explicit scoped-VMEM budget: double-buffered x/out blocks + (default
    # double-buffered) grid-invariant operands + bf16 im2col scratches, with
    # 2x headroom, clamped to [32 MiB, 64 MiB] so it stays v7x-portable.
    out_elt = jnp.dtype(out_dtype).itemsize
    x_blk = NB * L * Cin_p * 2
    out_blk = NB * L * Cout_p * out_elt
    w_bytes = (K * Cin_p * Cout_p + K * Cout_p * Cout_p
               + (Cin_p * Cout_p if has_downsample else 0)) * 2
    sb_bytes = (6 if has_downsample else 4) * Cout_p * 4
    scr_bytes = NB * L * K * (Cin_p + Cout_p) * 2
    vmem_est = 2 * (x_blk + out_blk) + 2 * (w_bytes + sb_bytes) + scr_bytes
    vmem_limit = int(min(max(2 * vmem_est + (4 << 20), 32 << 20), 64 << 20))

    out_nlc = pl.pallas_call(
        kernel,
        out_shape=jax.ShapeDtypeStruct((N, L, Cout_p), out_dtype),
        grid_spec=pltpu.PrefetchScalarGridSpec(
            num_scalar_prefetch=0,
            grid=(N // NB,),
            in_specs=in_specs,
            out_specs=pl.BlockSpec((NB, L, Cout_p), lambda n: (n, 0, 0)),
            scratch_shapes=[pltpu.VMEM((NB * L, K * Cin_p), jnp.bfloat16),
                            pltpu.VMEM((NB * L, K * Cout_p), jnp.bfloat16)],
        ),
        compiler_params=pltpu.CompilerParams(
            dimension_semantics=("parallel",),
            vmem_limit_bytes=vmem_limit),
    )(*inputs)

    # Drop the zero-padded channels and return PyTorch NCL layout.
    return jnp.transpose(out_nlc[:, :, :Cout], (0, 2, 1))          # (N, Cout, L)


def reference_forward(x_ncl, params, *, kernel_size=7, dilation=1):
    """Pure-JAX f32 eval-mode reference (mirrors the PyTorch module)."""
    pad = (kernel_size - 1) * dilation // 2

    def conv1d(x, w, p, d):
        return jax.lax.conv_general_dilated(
            x, w, window_strides=(1,), padding=[(p, p)], rhs_dilation=(d,),
            dimension_numbers=("NCH", "OIH", "NCH"))

    def bn(x, gamma, beta, mean, var, eps=1e-5):
        return ((x - mean[None, :, None]) / jnp.sqrt(var[None, :, None] + eps)
                * gamma[None, :, None] + beta[None, :, None])

    out = jax.nn.relu(bn(conv1d(x_ncl, params["w1"], pad, dilation), *params["bn1"]))
    out = bn(conv1d(out, params["w2"], pad, dilation), *params["bn2"])
    if params.get("wd") is not None:
        res = bn(conv1d(x_ncl, params["wd"], 0, 1), *params["bnd"])
    else:
        res = x_ncl
    return jax.nn.relu(out + res)


def make_params(key, in_channels, out_channels, kernel_size):
    ks = jax.random.split(key, 16)

    def bn_params(k0, k1, k2, k3, c):
        gamma = 1.0 + 0.1 * jax.random.normal(k0, (c,), jnp.float32)
        beta = 0.1 * jax.random.normal(k1, (c,), jnp.float32)
        mean = 0.1 * jax.random.normal(k2, (c,), jnp.float32)
        var = jax.random.uniform(k3, (c,), jnp.float32, 0.5, 1.5)
        return (gamma, beta, mean, var)

    p = {
        "w1": 0.2 * jax.random.normal(ks[0], (out_channels, in_channels, kernel_size), jnp.float32),
        "w2": 0.2 * jax.random.normal(ks[1], (out_channels, out_channels, kernel_size), jnp.float32),
        "bn1": bn_params(ks[3], ks[4], ks[5], ks[6], out_channels),
        "bn2": bn_params(ks[7], ks[8], ks[9], ks[10], out_channels),
        "wd": None,
        "bnd": None,
    }
    if in_channels != out_channels:
        p["wd"] = 0.2 * jax.random.normal(ks[2], (out_channels, in_channels, 1), jnp.float32)
        p["bnd"] = bn_params(ks[11], ks[12], ks[13], ks[14], out_channels)
    return p


def _round_bf16(a):
    """Round to bf16-representable f32 so the f32 reference and the bf16-MXU
    kernel differ only by in-kernel intermediate rounding."""
    return None if a is None else a.astype(jnp.bfloat16).astype(jnp.float32)


if __name__ == "__main__":
    key = jax.random.PRNGKey(0)

    # (N, Cin, Cout, L, K, dilation, batch_block): covers the downsample path
    # and the identity-residual path (+ dilation > 1) at small shapes; grid
    # length is kept >= 2 so the 'parallel' batch axis can shard across the
    # two TensorCores of a v7x chip.
    configs = [
        (4, 4, 8, 16, 7, 1, 2),
        (2, 8, 8, 16, 7, 2, 1),
    ]

    for (N, Cin, Cout, L, K, DIL, NB) in configs:
        key, k_x, k_p = jax.random.split(key, 3)
        x = jax.random.normal(k_x, (N, Cin, L), jnp.float32)
        params = make_params(k_p, Cin, Cout, K)

        # Pre-round matmul operands to bf16-representable values (kernel feeds
        # the MXU bf16 with f32 accumulation).
        x = _round_bf16(x)
        for name in ("w1", "w2", "wd"):
            params[name] = _round_bf16(params[name])

        out = temporal_block_forward(x, params, kernel_size=K, dilation=DIL,
                                     batch_block=NB)
        out = jax.block_until_ready(out)

        ref = reference_forward(x, params, kernel_size=K, dilation=DIL)
        assert out.shape == (N, Cout, L), out.shape
        err = float(jnp.max(jnp.abs(out - ref)))
        assert err < 2e-2, err

    print("KERNEL_OK")
</pallas_src>

<mosaic_0001>
module attributes {stable_mosaic.version = 11 : i64} {
  func.func @temporal_block_kernel(%arg0: i32, %arg1: memref<2x16x128xbf16, #tpu.memory_space<vmem>>, %arg2: memref<896x128xbf16, #tpu.memory_space<vmem>>, %arg3: memref<1x128xf32, #tpu.memory_space<vmem>>, %arg4: memref<1x128xf32, #tpu.memory_space<vmem>>, %arg5: memref<896x128xbf16, #tpu.memory_space<vmem>>, %arg6: memref<1x128xf32, #tpu.memory_space<vmem>>, %arg7: memref<1x128xf32, #tpu.memory_space<vmem>>, %arg8: memref<128x128xbf16, #tpu.memory_space<vmem>>, %arg9: memref<1x128xf32, #tpu.memory_space<vmem>>, %arg10: memref<1x128xf32, #tpu.memory_space<vmem>>, %arg11: memref<2x16x128xf32, #tpu.memory_space<vmem>>, %arg12: memref<32x896xbf16, #tpu.memory_space<vmem>>, %arg13: memref<32x896xbf16, #tpu.memory_space<vmem>>) attributes {dimension_semantics = [#tpu.dimension_semantics<parallel>], iteration_bounds = array<i64: 2>, scalar_prefetch = 0 : i64, scratch_operands = 2 : i64, tpu.core_type = #tpu.core_type<tc>, window_params = [{transform_indices = @transform_0, window_bounds = array<i64: 2, 16, 128>}, {pipeline_mode = #tpu.pipeline_mode<synchronous>, transform_indices = @transform_1, window_bounds = array<i64: 896, 128>}, {pipeline_mode = #tpu.pipeline_mode<synchronous>, transform_indices = @transform_2, window_bounds = array<i64: 1, 128>}, {pipeline_mode = #tpu.pipeline_mode<synchronous>, transform_indices = @transform_3, window_bounds = array<i64: 1, 128>}, {pipeline_mode = #tpu.pipeline_mode<synchronous>, transform_indices = @transform_4, window_bounds = array<i64: 896, 128>}, {pipeline_mode = #tpu.pipeline_mode<synchronous>, transform_indices = @transform_5, window_bounds = array<i64: 1, 128>}, {pipeline_mode = #tpu.pipeline_mode<synchronous>, transform_indices = @transform_6, window_bounds = array<i64: 1, 128>}, {pipeline_mode = #tpu.pipeline_mode<synchronous>, transform_indices = @transform_7, window_bounds = array<i64: 128, 128>}, {pipeline_mode = #tpu.pipeline_mode<synchronous>, transform_indices = @transform_8, window_bounds = array<i64: 1, 128>}, {pipeline_mode = #tpu.pipeline_mode<synchronous>, transform_indices = @transform_9, window_bounds = array<i64: 1, 128>}, {transform_indices = @transform_10, window_bounds = array<i64: 2, 16, 128>}]} {
    %c0 = arith.constant 0 : index
    %c0_0 = arith.constant 0 : index
    %0 = vector.load %arg3[%c0, %c0_0] : memref<1x128xf32, #tpu.memory_space<vmem>>, vector<1x128xf32>
    %c0_1 = arith.constant 0 : index
    %c0_2 = arith.constant 0 : index
    %1 = vector.load %arg4[%c0_1, %c0_2] : memref<1x128xf32, #tpu.memory_space<vmem>>, vector<1x128xf32>
    %c0_3 = arith.constant 0 : index
    %c0_4 = arith.constant 0 : index
    %2 = vector.load %arg6[%c0_3, %c0_4] : memref<1x128xf32, #tpu.memory_space<vmem>>, vector<1x128xf32>
    %c0_5 = arith.constant 0 : index
    %c0_6 = arith.constant 0 : index
    %3 = vector.load %arg7[%c0_5, %c0_6] : memref<1x128xf32, #tpu.memory_space<vmem>>, vector<1x128xf32>
    %cst = arith.constant 0.000000e+00 : bf16
    %4 = vector.broadcast %cst : bf16 to vector<16x128xbf16>
    %c0_7 = arith.constant 0 : index
    %c0_8 = arith.constant 0 : index
    %c0_9 = arith.constant 0 : index
    %5 = vector.load %arg1[%c0_7, %c0_8, %c0_9] : memref<2x16x128xbf16, #tpu.memory_space<vmem>>, vector<1x16x128xbf16>
    %6 = vector.shape_cast %5 : vector<1x16x128xbf16> to vector<16x128xbf16>
    %7 = vector.extract_strided_slice %4 {offsets = [0, 0], sizes = [3, 128], strides = [1, 1]} : vector<16x128xbf16> to vector<3x128xbf16>
    %c0_10 = arith.constant 0 : index
    %c0_11 = arith.constant 0 : index
    %8 = vector.load %arg12[%c0_10, %c0_11] : memref<32x896xbf16, #tpu.memory_space<vmem>>, vector<3x128xbf16>
    tpu.vector_store %arg12[%c0_10, %c0_11], %7 {strides = array<i32>} : memref<32x896xbf16, #tpu.memory_space<vmem>>, vector<3x128xbf16>,
    %9 = vector.extract_strided_slice %6 {offsets = [0, 0], sizes = [13, 128], strides = [1, 1]} : vector<16x128xbf16> to vector<13x128xbf16>
    %c3 = arith.constant 3 : index
    %c0_12 = arith.constant 0 : index
    %10 = vector.load %arg12[%c3, %c0_12] : memref<32x896xbf16, #tpu.memory_space<vmem>>, vector<13x128xbf16>
    tpu.vector_store %arg12[%c3, %c0_12], %9 {strides = array<i32>} : memref<32x896xbf16, #tpu.memory_space<vmem>>, vector<13x128xbf16>,
    %11 = vector.extract_strided_slice %4 {offsets = [0, 0], sizes = [2, 128], strides = [1, 1]} : vector<16x128xbf16> to vector<2x128xbf16>
    %c0_13 = arith.constant 0 : index
    %c128 = arith.constant 128 : index
    %12 = vector.load %arg12[%c0_13, %c128] : memref<32x896xbf16, #tpu.memory_space<vmem>>, vector<2x128xbf16>
    tpu.vector_store %arg12[%c0_13, %c128], %11 {strides = array<i32>} : memref<32x896xbf16, #tpu.memory_space<vmem>>, vector<2x128xbf16>,
    %13 = vector.extract_strided_slice %6 {offsets = [0, 0], sizes = [14, 128], strides = [1, 1]} : vector<16x128xbf16> to vector<14x128xbf16>
    %c2 = arith.constant 2 : index
    %c128_14 = arith.constant 128 : index
    %14 = vector.load %arg12[%c2, %c128_14] : memref<32x896xbf16, #tpu.memory_space<vmem>>, vector<14x128xbf16>
    tpu.vector_store %arg12[%c2, %c128_14], %13 {strides = array<i32>} : memref<32x896xbf16, #tpu.memory_space<vmem>>, vector<14x128xbf16>,
    %15 = vector.extract_strided_slice %4 {offsets = [0, 0], sizes = [1, 128], strides = [1, 1]} : vector<16x128xbf16> to vector<1x128xbf16>
    %c0_15 = arith.constant 0 : index
    %c256 = arith.constant 256 : index
    %16 = vector.load %arg12[%c0_15, %c256] : memref<32x896xbf16, #tpu.memory_space<vmem>>, vector<1x128xbf16>
    tpu.vector_store %arg12[%c0_15, %c256], %15 {strides = array<i32>} : memref<32x896xbf16, #tpu.memory_space<vmem>>, vector<1x128xbf16>,
    %17 = vector.extract_strided_slice %6 {offsets = [0, 0], sizes = [15, 128], strides = [1, 1]} : vector<16x128xbf16> to vector<15x128xbf16>
    %c1 = arith.constant 1 : index
    %c256_16 = arith.constant 256 : index
    %18 = vector.load %arg12[%c1, %c256_16] : memref<32x896xbf16, #tpu.memory_space<vmem>>, vector<15x128xbf16>
    tpu.vector_store %arg12[%c1, %c256_16], %17 {strides = array<i32>} : memref<32x896xbf16, #tpu.memory_space<vmem>>, vector<15x128xbf16>,
    %c0_17 = arith.constant 0 : index
    %c384 = arith.constant 384 : index
    %19 = vector.load %arg12[%c0_17, %c384] : memref<32x896xbf16, #tpu.memory_space<vmem>>, vector<16x128xbf16>
    tpu.vector_store %arg12[%c0_17, %c384], %6 {strides = array<i32>} : memref<32x896xbf16, #tpu.memory_space<vmem>>, vector<16x128xbf16>,
    %20 = vector.extract_strided_slice %4 {offsets = [0, 0], sizes = [1, 128], strides = [1, 1]} : vector<16x128xbf16> to vector<1x128xbf16>
    %c15 = arith.constant 15 : index
    %c512 = arith.constant 512 : index
    %21 = vector.load %arg12[%c15, %c512] : memref<32x896xbf16, #tpu.memory_space<vmem>>, vector<1x128xbf16>
    tpu.vector_store %arg12[%c15, %c512], %20 {strides = array<i32>} : memref<32x896xbf16, #tpu.memory_space<vmem>>, vector<1x128xbf16>,
    %22 = vector.extract_strided_slice %6 {offsets = [1, 0], sizes = [15, 128], strides = [1, 1]} : vector<16x128xbf16> to vector<15x128xbf16>
    %c0_18 = arith.constant 0 : index
    %c512_19 = arith.constant 512 : index
    %23 = vector.load %arg12[%c0_18, %c512_19] : memref<32x896xbf16, #tpu.memory_space<vmem>>, vector<15x128xbf16>
    tpu.vector_store %arg12[%c0_18, %c512_19], %22 {strides = array<i32>} : memref<32x896xbf16, #tpu.memory_space<vmem>>, vector<15x128xbf16>,
    %24 = vector.extract_strided_slice %4 {offsets = [0, 0], sizes = [2, 128], strides = [1, 1]} : vector<16x128xbf16> to vector<2x128xbf16>
    %c14 = arith.constant 14 : index
    %c640 = arith.constant 640 : index
    %25 = vector.load %arg12[%c14, %c640] : memref<32x896xbf16, #tpu.memory_space<vmem>>, vector<2x128xbf16>
    tpu.vector_store %arg12[%c14, %c640], %24 {strides = array<i32>} : memref<32x896xbf16, #tpu.memory_space<vmem>>, vector<2x128xbf16>,
    %26 = vector.extract_strided_slice %6 {offsets = [2, 0], sizes = [14, 128], strides = [1, 1]} : vector<16x128xbf16> to vector<14x128xbf16>
    %c0_20 = arith.constant 0 : index
    %c640_21 = arith.constant 640 : index
    %27 = vector.load %arg12[%c0_20, %c640_21] : memref<32x896xbf16, #tpu.memory_space<vmem>>, vector<14x128xbf16>
    tpu.vector_store %arg12[%c0_20, %c640_21], %26 {strides = array<i32>} : memref<32x896xbf16, #tpu.memory_space<vmem>>, vector<14x128xbf16>,
    %28 = vector.extract_strided_slice %4 {offsets = [0, 0], sizes = [3, 128], strides = [1, 1]} : vector<16x128xbf16> to vector<3x128xbf16>
    %c13 = arith.constant 13 : index
    %c768 = arith.constant 768 : index
    %29 = vector.load %arg12[%c13, %c768] : memref<32x896xbf16, #tpu.memory_space<vmem>>, vector<3x128xbf16>
    tpu.vector_store %arg12[%c13, %c768], %28 {strides = array<i32>} : memref<32x896xbf16, #tpu.memory_space<vmem>>, vector<3x128xbf16>,
    %30 = vector.extract_strided_slice %6 {offsets = [3, 0], sizes = [13, 128], strides = [1, 1]} : vector<16x128xbf16> to vector<13x128xbf16>
    %c0_22 = arith.constant 0 : index
    %c768_23 = arith.constant 768 : index
    %31 = vector.load %arg12[%c0_22, %c768_23] : memref<32x896xbf16, #tpu.memory_space<vmem>>, vector<13x128xbf16>
    tpu.vector_store %arg12[%c0_22, %c768_23], %30 {strides = array<i32>} : memref<32x896xbf16, #tpu.memory_space<vmem>>, vector<13x128xbf16>,
    %c1_24 = arith.constant 1 : index
    %c0_25 = arith.constant 0 : index
    %c0_26 = arith.constant 0 : index
    %32 = vector.load %arg1[%c1_24, %c0_25, %c0_26] : memref<2x16x128xbf16, #tpu.memory_space<vmem>>, vector<1x16x128xbf16>
    %33 = vector.shape_cast %32 : vector<1x16x128xbf16> to vector<16x128xbf16>
    %34 = vector.extract_strided_slice %4 {offsets = [0, 0], sizes = [3, 128], strides = [1, 1]} : vector<16x128xbf16> to vector<3x128xbf16>
    %c16 = arith.constant 16 : index
    %c0_27 = arith.constant 0 : index
    %35 = vector.load %arg12[%c16, %c0_27] : memref<32x896xbf16, #tpu.memory_space<vmem>>, vector<3x128xbf16>
    tpu.vector_store %arg12[%c16, %c0_27], %34 {strides = array<i32>} : memref<32x896xbf16, #tpu.memory_space<vmem>>, vector<3x128xbf16>,
    %36 = vector.extract_strided_slice %33 {offsets = [0, 0], sizes = [13, 128], strides = [1, 1]} : vector<16x128xbf16> to vector<13x128xbf16>
    %c19 = arith.constant 19 : index
    %c0_28 = arith.constant 0 : index
    %37 = vector.load %arg12[%c19, %c0_28] : memref<32x896xbf16, #tpu.memory_space<vmem>>, vector<13x128xbf16>
    tpu.vector_store %arg12[%c19, %c0_28], %36 {strides = array<i32>} : memref<32x896xbf16, #tpu.memory_space<vmem>>, vector<13x128xbf16>,
    %38 = vector.extract_strided_slice %4 {offsets = [0, 0], sizes = [2, 128], strides = [1, 1]} : vector<16x128xbf16> to vector<2x128xbf16>
    %c16_29 = arith.constant 16 : index
    %c128_30 = arith.constant 128 : index
    %39 = vector.load %arg12[%c16_29, %c128_30] : memref<32x896xbf16, #tpu.memory_space<vmem>>, vector<2x128xbf16>
    tpu.vector_store %arg12[%c16_29, %c128_30], %38 {strides = array<i32>} : memref<32x896xbf16, #tpu.memory_space<vmem>>, vector<2x128xbf16>,
    %40 = vector.extract_strided_slice %33 {offsets = [0, 0], sizes = [14, 128], strides = [1, 1]} : vector<16x128xbf16> to vector<14x128xbf16>
    %c18 = arith.constant 18 : index
    %c128_31 = arith.constant 128 : index
    %41 = vector.load %arg12[%c18, %c128_31] : memref<32x896xbf16, #tpu.memory_space<vmem>>, vector<14x128xbf16>
    tpu.vector_store %arg12[%c18, %c128_31], %40 {strides = array<i32>} : memref<32x896xbf16, #tpu.memory_space<vmem>>, vector<14x128xbf16>,
    %42 = vector.extract_strided_slice %4 {offsets = [0, 0], sizes = [1, 128], strides = [1, 1]} : vector<16x128xbf16> to vector<1x128xbf16>
    %c16_32 = arith.constant 16 : index
    %c256_33 = arith.constant 256 : index
    %43 = vector.load %arg12[%c16_32, %c256_33] : memref<32x896xbf16, #tpu.memory_space<vmem>>, vector<1x128xbf16>
    tpu.vector_store %arg12[%c16_32, %c256_33], %42 {strides = array<i32>} : memref<32x896xbf16, #tpu.memory_space<vmem>>, vector<1x128xbf16>,
    %44 = vector.extract_strided_slice %33 {offsets = [0, 0], sizes = [15, 128], strides = [1, 1]} : vector<16x128xbf16> to vector<15x128xbf16>
    %c17 = arith.constant 17 : index
    %c256_34 = arith.constant 256 : index
    %45 = vector.load %arg12[%c17, %c256_34] : memref<32x896xbf16, #tpu.memory_space<vmem>>, vector<15x128xbf16>
    tpu.vector_store %arg12[%c17, %c256_34], %44 {strides = array<i32>} : memref<32x896xbf16, #tpu.memory_space<vmem>>, vector<15x128xbf16>,
    %c16_35 = arith.constant 16 : index
    %c384_36 = arith.constant 384 : index
    %46 = vector.load %arg12[%c16_35, %c384_36] : memref<32x896xbf16, #tpu.memory_space<vmem>>, vector<16x128xbf16>
    tpu.vector_store %arg12[%c16_35, %c384_36], %33 {strides = array<i32>} : memref<32x896xbf16, #tpu.memory_space<vmem>>, vector<16x128xbf16>,
    %47 = vector.extract_strided_slice %4 {offsets = [0, 0], sizes = [1, 128], strides = [1, 1]} : vector<16x128xbf16> to vector<1x128xbf16>
    %c31 = arith.constant 31 : index
    %c512_37 = arith.constant 512 : index
    %48 = vector.load %arg12[%c31, %c512_37] : memref<32x896xbf16, #tpu.memory_space<vmem>>, vector<1x128xbf16>
    tpu.vector_store %arg12[%c31, %c512_37], %47 {strides = array<i32>} : memref<32x896xbf16, #tpu.memory_space<vmem>>, vector<1x128xbf16>,
    %49 = vector.extract_strided_slice %33 {offsets = [1, 0], sizes = [15, 128], strides = [1, 1]} : vector<16x128xbf16> to vector<15x128xbf16>
    %c16_38 = arith.constant 16 : index
    %c512_39 = arith.constant 512 : index
    %50 = vector.load %arg12[%c16_38, %c512_39] : memref<32x896xbf16, #tpu.memory_space<vmem>>, vector<15x128xbf16>
    tpu.vector_store %arg12[%c16_38, %c512_39], %49 {strides = array<i32>} : memref<32x896xbf16, #tpu.memory_space<vmem>>, vector<15x128xbf16>,
    %51 = vector.extract_strided_slice %4 {offsets = [0, 0], sizes = [2, 128], strides = [1, 1]} : vector<16x128xbf16> to vector<2x128xbf16>
    %c30 = arith.constant 30 : index
    %c640_40 = arith.constant 640 : index
    %52 = vector.load %arg12[%c30, %c640_40] : memref<32x896xbf16, #tpu.memory_space<vmem>>, vector<2x128xbf16>
    tpu.vector_store %arg12[%c30, %c640_40], %51 {strides = array<i32>} : memref<32x896xbf16, #tpu.memory_space<vmem>>, vector<2x128xbf16>,
    %53 = vector.extract_strided_slice %33 {offsets = [2, 0], sizes = [14, 128], strides = [1, 1]} : vector<16x128xbf16> to vector<14x128xbf16>
    %c16_41 = arith.constant 16 : index
    %c640_42 = arith.constant 640 : index
    %54 = vector.load %arg12[%c16_41, %c640_42] : memref<32x896xbf16, #tpu.memory_space<vmem>>, vector<14x128xbf16>
    tpu.vector_store %arg12[%c16_41, %c640_42], %53 {strides = array<i32>} : memref<32x896xbf16, #tpu.memory_space<vmem>>, vector<14x128xbf16>,
    %55 = vector.extract_strided_slice %4 {offsets = [0, 0], sizes = [3, 128], strides = [1, 1]} : vector<16x128xbf16> to vector<3x128xbf16>
    %c29 = arith.constant 29 : index
    %c768_43 = arith.constant 768 : index
    %56 = vector.load %arg12[%c29, %c768_43] : memref<32x896xbf16, #tpu.memory_space<vmem>>, vector<3x128xbf16>
    tpu.vector_store %arg12[%c29, %c768_43], %55 {strides = array<i32>} : memref<32x896xbf16, #tpu.memory_space<vmem>>, vector<3x128xbf16>,
    %57 = vector.extract_strided_slice %33 {offsets = [3, 0], sizes = [13, 128], strides = [1, 1]} : vector<16x128xbf16> to vector<13x128xbf16>
    %c16_44 = arith.constant 16 : index
    %c768_45 = arith.constant 768 : index
    %58 = vector.load %arg12[%c16_44, %c768_45] : memref<32x896xbf16, #tpu.memory_space<vmem>>, vector<13x128xbf16>
    tpu.vector_store %arg12[%c16_44, %c768_45], %57 {strides = array<i32>} : memref<32x896xbf16, #tpu.memory_space<vmem>>, vector<13x128xbf16>,
    %c0_46 = arith.constant 0 : index
    %c0_47 = arith.constant 0 : index
    %59 = vector.load %arg12[%c0_46, %c0_47] : memref<32x896xbf16, #tpu.memory_space<vmem>>, vector<32x896xbf16>
    %c0_48 = arith.constant 0 : index
    %c0_49 = arith.constant 0 : index
    %60 = vector.load %arg2[%c0_48, %c0_49] : memref<896x128xbf16, #tpu.memory_space<vmem>>, vector<896x128xbf16>
    %cst_50 = arith.constant dense<0.000000e+00> : vector<32x128xf32>
    %61 = tpu.matmul %59, %60, %cst_50 {dimension_numbers = #tpu.dot_dimension_numbers<[1], [0], [0], [1], [0, 0, 1, 1], [], []>} : vector<32x896xbf16>, vector<896x128xbf16>, vector<32x128xf32> -> vector<32x128xf32>
    %62 = vector.broadcast %0 : vector<1x128xf32> to vector<32x128xf32>
    %63 = arith.mulf %61, %62 : vector<32x128xf32>
    %64 = vector.broadcast %1 : vector<1x128xf32> to vector<32x128xf32>
    %65 = arith.addf %63, %64 : vector<32x128xf32>
    %cst_51 = arith.constant 0.000000e+00 : f32
    %66 = vector.broadcast %cst_51 : f32 to vector<32x128xf32>
    %67 = arith.maximumf %65, %66 : vector<32x128xf32>
    %68 = arith.truncf %67 : vector<32x128xf32> to vector<32x128xbf16>
    %cst_52 = arith.constant 0.000000e+00 : bf16
    %69 = vector.broadcast %cst_52 : bf16 to vector<16x128xbf16>
    %70 = vector.extract_strided_slice %68 {offsets = [0, 0], sizes = [16, 128], strides = [1, 1]} : vector<32x128xbf16> to vector<16x128xbf16>
    %71 = vector.extract_strided_slice %69 {offsets = [0, 0], sizes = [3, 128], strides = [1, 1]} : vector<16x128xbf16> to vector<3x128xbf16>
    %c0_53 = arith.constant 0 : index
    %c0_54 = arith.constant 0 : index
    %72 = vector.load %arg13[%c0_53, %c0_54] : memref<32x896xbf16, #tpu.memory_space<vmem>>, vector<3x128xbf16>
    tpu.vector_store %arg13[%c0_53, %c0_54], %71 {strides = array<i32>} : memref<32x896xbf16, #tpu.memory_space<vmem>>, vector<3x128xbf16>,
    %73 = vector.extract_strided_slice %70 {offsets = [0, 0], sizes = [13, 128], strides = [1, 1]} : vector<16x128xbf16> to vector<13x128xbf16>
    %c3_55 = arith.constant 3 : index
    %c0_56 = arith.constant 0 : index
    %74 = vector.load %arg13[%c3_55, %c0_56] : memref<32x896xbf16, #tpu.memory_space<vmem>>, vector<13x128xbf16>
    tpu.vector_store %arg13[%c3_55, %c0_56], %73 {strides = array<i32>} : memref<32x896xbf16, #tpu.memory_space<vmem>>, vector<13x128xbf16>,
    %75 = vector.extract_strided_slice %69 {offsets = [0, 0], sizes = [2, 128], strides = [1, 1]} : vector<16x128xbf16> to vector<2x128xbf16>
    %c0_57 = arith.constant 0 : index
    %c128_58 = arith.constant 128 : index
    %76 = vector.load %arg13[%c0_57, %c128_58] : memref<32x896xbf16, #tpu.memory_space<vmem>>, vector<2x128xbf16>
    tpu.vector_store %arg13[%c0_57, %c128_58], %75 {strides = array<i32>} : memref<32x896xbf16, #tpu.memory_space<vmem>>, vector<2x128xbf16>,
    %77 = vector.extract_strided_slice %70 {offsets = [0, 0], sizes = [14, 128], strides = [1, 1]} : vector<16x128xbf16> to vector<14x128xbf16>
    %c2_59 = arith.constant 2 : index
    %c128_60 = arith.constant 128 : index
    %78 = vector.load %arg13[%c2_59, %c128_60] : memref<32x896xbf16, #tpu.memory_space<vmem>>, vector<14x128xbf16>
    tpu.vector_store %arg13[%c2_59, %c128_60], %77 {strides = array<i32>} : memref<32x896xbf16, #tpu.memory_space<vmem>>, vector<14x128xbf16>,
    %79 = vector.extract_strided_slice %69 {offsets = [0, 0], sizes = [1, 128], strides = [1, 1]} : vector<16x128xbf16> to vector<1x128xbf16>
    %c0_61 = arith.constant 0 : index
    %c256_62 = arith.constant 256 : index
    %80 = vector.load %arg13[%c0_61, %c256_62] : memref<32x896xbf16, #tpu.memory_space<vmem>>, vector<1x128xbf16>
    tpu.vector_store %arg13[%c0_61, %c256_62], %79 {strides = array<i32>} : memref<32x896xbf16, #tpu.memory_space<vmem>>, vector<1x128xbf16>,
    %81 = vector.extract_strided_slice %70 {offsets = [0, 0], sizes = [15, 128], strides = [1, 1]} : vector<16x128xbf16> to vector<15x128xbf16>
    %c1_63 = arith.constant 1 : index
    %c256_64 = arith.constant 256 : index
    %82 = vector.load %arg13[%c1_63, %c256_64] : memref<32x896xbf16, #tpu.memory_space<vmem>>, vector<15x128xbf16>
    tpu.vector_store %arg13[%c1_63, %c256_64], %81 {strides = array<i32>} : memref<32x896xbf16, #tpu.memory_space<vmem>>, vector<15x128xbf16>,
    %c0_65 = arith.constant 0 : index
    %c384_66 = arith.constant 384 : index
    %83 = vector.load %arg13[%c0_65, %c384_66] : memref<32x896xbf16, #tpu.memory_space<vmem>>, vector<16x128xbf16>
    tpu.vector_store %arg13[%c0_65, %c384_66], %70 {strides = array<i32>} : memref<32x896xbf16, #tpu.memory_space<vmem>>, vector<16x128xbf16>,
    %84 = vector.extract_strided_slice %69 {offsets = [0, 0], sizes = [1, 128], strides = [1, 1]} : vector<16x128xbf16> to vector<1x128xbf16>
    %c15_67 = arith.constant 15 : index
    %c512_68 = arith.constant 512 : index
    %85 = vector.load %arg13[%c15_67, %c512_68] : memref<32x896xbf16, #tpu.memory_space<vmem>>, vector<1x128xbf16>
    tpu.vector_store %arg13[%c15_67, %c512_68], %84 {strides = array<i32>} : memref<32x896xbf16, #tpu.memory_space<vmem>>, vector<1x128xbf16>,
    %86 = vector.extract_strided_slice %70 {offsets = [1, 0], sizes = [15, 128], strides = [1, 1]} : vector<16x128xbf16> to vector<15x128xbf16>
    %c0_69 = arith.constant 0 : index
    %c512_70 = arith.constant 512 : index
    %87 = vector.load %arg13[%c0_69, %c512_70] : memref<32x896xbf16, #tpu.memory_space<vmem>>, vector<15x128xbf16>
    tpu.vector_store %arg13[%c0_69, %c512_70], %86 {strides = array<i32>} : memref<32x896xbf16, #tpu.memory_space<vmem>>, vector<15x128xbf16>,
    %88 = vector.extract_strided_slice %69 {offsets = [0, 0], sizes = [2, 128], strides = [1, 1]} : vector<16x128xbf16> to vector<2x128xbf16>
    %c14_71 = arith.constant 14 : index
    %c640_72 = arith.constant 640 : index
    %89 = vector.load %arg13[%c14_71, %c640_72] : memref<32x896xbf16, #tpu.memory_space<vmem>>, vector<2x128xbf16>
    tpu.vector_store %arg13[%c14_71, %c640_72], %88 {strides = array<i32>} : memref<32x896xbf16, #tpu.memory_space<vmem>>, vector<2x128xbf16>,
    %90 = vector.extract_strided_slice %70 {offsets = [2, 0], sizes = [14, 128], strides = [1, 1]} : vector<16x128xbf16> to vector<14x128xbf16>
    %c0_73 = arith.constant 0 : index
    %c640_74 = arith.constant 640 : index
    %91 = vector.load %arg13[%c0_73, %c640_74] : memref<32x896xbf16, #tpu.memory_space<vmem>>, vector<14x128xbf16>
    tpu.vector_store %arg13[%c0_73, %c640_74], %90 {strides = array<i32>} : memref<32x896xbf16, #tpu.memory_space<vmem>>, vector<14x128xbf16>,
    %92 = vector.extract_strided_slice %69 {offsets = [0, 0], sizes = [3, 128], strides = [1, 1]} : vector<16x128xbf16> to vector<3x128xbf16>
    %c13_75 = arith.constant 13 : index
    %c768_76 = arith.constant 768 : index
    %93 = vector.load %arg13[%c13_75, %c768_76] : memref<32x896xbf16, #tpu.memory_space<vmem>>, vector<3x128xbf16>
    tpu.vector_store %arg13[%c13_75, %c768_76], %92 {strides = array<i32>} : memref<32x896xbf16, #tpu.memory_space<vmem>>, vector<3x128xbf16>,
    %94 = vector.extract_strided_slice %70 {offsets = [3, 0], sizes = [13, 128], strides = [1, 1]} : vector<16x128xbf16> to vector<13x128xbf16>
    %c0_77 = arith.constant 0 : index
    %c768_78 = arith.constant 768 : index
    %95 = vector.load %arg13[%c0_77, %c768_78] : memref<32x896xbf16, #tpu.memory_space<vmem>>, vector<13x128xbf16>
    tpu.vector_store %arg13[%c0_77, %c768_78], %94 {strides = array<i32>} : memref<32x896xbf16, #tpu.memory_space<vmem>>, vector<13x128xbf16>,
    %96 = vector.extract_strided_slice %68 {offsets = [16, 0], sizes = [16, 128], strides = [1, 1]} : vector<32x128xbf16> to vector<16x128xbf16>
    %97 = vector.extract_strided_slice %69 {offsets = [0, 0], sizes = [3, 128], strides = [1, 1]} : vector<16x128xbf16> to vector<3x128xbf16>
    %c16_79 = arith.constant 16 : index
    %c0_80 = arith.constant 0 : index
    %98 = vector.load %arg13[%c16_79, %c0_80] : memref<32x896xbf16, #tpu.memory_space<vmem>>, vector<3x128xbf16>
    tpu.vector_store %arg13[%c16_79, %c0_80], %97 {strides = array<i32>} : memref<32x896xbf16, #tpu.memory_space<vmem>>, vector<3x128xbf16>,
    %99 = vector.extract_strided_slice %96 {offsets = [0, 0], sizes = [13, 128], strides = [1, 1]} : vector<16x128xbf16> to vector<13x128xbf16>
    %c19_81 = arith.constant 19 : index
    %c0_82 = arith.constant 0 : index
    %100 = vector.load %arg13[%c19_81, %c0_82] : memref<32x896xbf16, #tpu.memory_space<vmem>>, vector<13x128xbf16>
    tpu.vector_store %arg13[%c19_81, %c0_82], %99 {strides = array<i32>} : memref<32x896xbf16, #tpu.memory_space<vmem>>, vector<13x128xbf16>,
    %101 = vector.extract_strided_slice %69 {offsets = [0, 0], sizes = [2, 128], strides = [1, 1]} : vector<16x128xbf16> to vector<2x128xbf16>
    %c16_83 = arith.constant 16 : index
    %c128_84 = arith.constant 128 : index
    %102 = vector.load %arg13[%c16_83, %c128_84] : memref<32x896xbf16, #tpu.memory_space<vmem>>, vector<2x128xbf16>
    tpu.vector_store %arg13[%c16_83, %c128_84], %101 {strides = array<i32>} : memref<32x896xbf16, #tpu.memory_space<vmem>>, vector<2x128xbf16>,
    %103 = vector.extract_strided_slice %96 {offsets = [0, 0], sizes = [14, 128], strides = [1, 1]} : vector<16x128xbf16> to vector<14x128xbf16>
    %c18_85 = arith.constant 18 : index
    %c128_86 = arith.constant 128 : index
    %104 = vector.load %arg13[%c18_85, %c128_86] : memref<32x896xbf16, #tpu.memory_space<vmem>>, vector<14x128xbf16>
    tpu.vector_store %arg13[%c18_85, %c128_86], %103 {strides = array<i32>} : memref<32x896xbf16, #tpu.memory_space<vmem>>, vector<14x128xbf16>,
    %105 = vector.extract_strided_slice %69 {offsets = [0, 0], sizes = [1, 128], strides = [1, 1]} : vector<16x128xbf16> to vector<1x128xbf16>
    %c16_87 = arith.constant 16 : index
    %c256_88 = arith.constant 256 : index
    %106 = vector.load %arg13[%c16_87, %c256_88] : memref<32x896xbf16, #tpu.memory_space<vmem>>, vector<1x128xbf16>
    tpu.vector_store %arg13[%c16_87, %c256_88], %105 {strides = array<i32>} : memref<32x896xbf16, #tpu.memory_space<vmem>>, vector<1x128xbf16>,
    %107 = vector.extract_strided_slice %96 {offsets = [0, 0], sizes = [15, 128], strides = [1, 1]} : vector<16x128xbf16> to vector<15x128xbf16>
    %c17_89 = arith.constant 17 : index
    %c256_90 = arith.constant 256 : index
    %108 = vector.load %arg13[%c17_89, %c256_90] : memref<32x896xbf16, #tpu.memory_space<vmem>>, vector<15x128xbf16>
    tpu.vector_store %arg13[%c17_89, %c256_90], %107 {strides = array<i32>} : memref<32x896xbf16, #tpu.memory_space<vmem>>, vector<15x128xbf16>,
    %c16_91 = arith.constant 16 : index
    %c384_92 = arith.constant 384 : index
    %109 = vector.load %arg13[%c16_91, %c384_92] : memref<32x896xbf16, #tpu.memory_space<vmem>>, vector<16x128xbf16>
    tpu.vector_store %arg13[%c16_91, %c384_92], %96 {strides = array<i32>} : memref<32x896xbf16, #tpu.memory_space<vmem>>, vector<16x128xbf16>,
    %110 = vector.extract_strided_slice %69 {offsets = [0, 0], sizes = [1, 128], strides = [1, 1]} : vector<16x128xbf16> to vector<1x128xbf16>
    %c31_93 = arith.constant 31 : index
    %c512_94 = arith.constant 512 : index
    %111 = vector.load %arg13[%c31_93, %c512_94] : memref<32x896xbf16, #tpu.memory_space<vmem>>, vector<1x128xbf16>
    tpu.vector_store %arg13[%c31_93, %c512_94], %110 {strides = array<i32>} : memref<32x896xbf16, #tpu.memory_space<vmem>>, vector<1x128xbf16>,
    %112 = vector.extract_strided_slice %96 {offsets = [1, 0], sizes = [15, 128], strides = [1, 1]} : vector<16x128xbf16> to vector<15x128xbf16>
    %c16_95 = arith.constant 16 : index
    %c512_96 = arith.constant 512 : index
    %113 = vector.load %arg13[%c16_95, %c512_96] : memref<32x896xbf16, #tpu.memory_space<vmem>>, vector<15x128xbf16>
    tpu.vector_store %arg13[%c16_95, %c512_96], %112 {strides = array<i32>} : memref<32x896xbf16, #tpu.memory_space<vmem>>, vector<15x128xbf16>,
    %114 = vector.extract_strided_slice %69 {offsets = [0, 0], sizes = [2, 128], strides = [1, 1]} : vector<16x128xbf16> to vector<2x128xbf16>
    %c30_97 = arith.constant 30 : index
    %c640_98 = arith.constant 640 : index
    %115 = vector.load %arg13[%c30_97, %c640_98] : memref<32x896xbf16, #tpu.memory_space<vmem>>, vector<2x128xbf16>
    tpu.vector_store %arg13[%c30_97, %c640_98], %114 {strides = array<i32>} : memref<32x896xbf16, #tpu.memory_space<vmem>>, vector<2x128xbf16>,
    %116 = vector.extract_strided_slice %96 {offsets = [2, 0], sizes = [14, 128], strides = [1, 1]} : vector<16x128xbf16> to vector<14x128xbf16>
    %c16_99 = arith.constant 16 : index
    %c640_100 = arith.constant 640 : index
    %117 = vector.load %arg13[%c16_99, %c640_100] : memref<32x896xbf16, #tpu.memory_space<vmem>>, vector<14x128xbf16>
    tpu.vector_store %arg13[%c16_99, %c640_100], %116 {strides = array<i32>} : memref<32x896xbf16, #tpu.memory_space<vmem>>, vector<14x128xbf16>,
    %118 = vector.extract_strided_slice %69 {offsets = [0, 0], sizes = [3, 128], strides = [1, 1]} : vector<16x128xbf16> to vector<3x128xbf16>
    %c29_101 = arith.constant 29 : index
    %c768_102 = arith.constant 768 : index
    %119 = vector.load %arg13[%c29_101, %c768_102] : memref<32x896xbf16, #tpu.memory_space<vmem>>, vector<3x128xbf16>
    tpu.vector_store %arg13[%c29_101, %c768_102], %118 {strides = array<i32>} : memref<32x896xbf16, #tpu.memory_space<vmem>>, vector<3x128xbf16>,
    %120 = vector.extract_strided_slice %96 {offsets = [3, 0], sizes = [13, 128], strides = [1, 1]} : vector<16x128xbf16> to vector<13x128xbf16>
    %c16_103 = arith.constant 16 : index
    %c768_104 = arith.constant 768 : index
    %121 = vector.load %arg13[%c16_103, %c768_104] : memref<32x896xbf16, #tpu.memory_space<vmem>>, vector<13x128xbf16>
    tpu.vector_store %arg13[%c16_103, %c768_104], %120 {strides = array<i32>} : memref<32x896xbf16, #tpu.memory_space<vmem>>, vector<13x128xbf16>,
    %c0_105 = arith.constant 0 : index
    %c0_106 = arith.constant 0 : index
    %122 = vector.load %arg13[%c0_105, %c0_106] : memref<32x896xbf16, #tpu.memory_space<vmem>>, vector<32x896xbf16>
    %c0_107 = arith.constant 0 : index
    %c0_108 = arith.constant 0 : index
    %123 = vector.load %arg5[%c0_107, %c0_108] : memref<896x128xbf16, #tpu.memory_space<vmem>>, vector<896x128xbf16>
    %cst_109 = arith.constant dense<0.000000e+00> : vector<32x128xf32>
    %124 = tpu.matmul %122, %123, %cst_109 {dimension_numbers = #tpu.dot_dimension_numbers<[1], [0], [0], [1], [0, 0, 1, 1], [], []>} : vector<32x896xbf16>, vector<896x128xbf16>, vector<32x128xf32> -> vector<32x128xf32>
    %125 = vector.broadcast %2 : vector<1x128xf32> to vector<32x128xf32>
    %126 = arith.mulf %124, %125 : vector<32x128xf32>
    %127 = vector.broadcast %3 : vector<1x128xf32> to vector<32x128xf32>
    %128 = arith.addf %126, %127 : vector<32x128xf32>
    %c0_110 = arith.constant 0 : index
    %c0_111 = arith.constant 0 : index
    %c0_112 = arith.constant 0 : index
    %129 = vector.load %arg1[%c0_110, %c0_111, %c0_112] : memref<2x16x128xbf16, #tpu.memory_space<vmem>>, vector<2x16x128xbf16>
    %130 = vector.shape_cast %129 : vector<2x16x128xbf16> to vector<32x128xbf16>
    %c0_113 = arith.constant 0 : index
    %c0_114 = arith.constant 0 : index
    %131 = vector.load %arg8[%c0_113, %c0_114] : memref<128x128xbf16, #tpu.memory_space<vmem>>, vector<128x128xbf16>
    %cst_115 = arith.constant dense<0.000000e+00> : vector<32x128xf32>
    %132 = tpu.matmul %130, %131, %cst_115 {dimension_numbers = #tpu.dot_dimension_numbers<[1], [0], [0], [1], [0, 0, 1, 1], [], []>} : vector<32x128xbf16>, vector<128x128xbf16>, vector<32x128xf32> -> vector<32x128xf32>
    %c0_116 = arith.constant 0 : index
    %c0_117 = arith.constant 0 : index
    %133 = vector.load %arg9[%c0_116, %c0_117] : memref<1x128xf32, #tpu.memory_space<vmem>>, vector<1x128xf32>
    %134 = vector.broadcast %133 : vector<1x128xf32> to vector<32x128xf32>
    %135 = arith.mulf %132, %134 : vector<32x128xf32>
    %c0_118 = arith.constant 0 : index
    %c0_119 = arith.constant 0 : index
    %136 = vector.load %arg10[%c0_118, %c0_119] : memref<1x128xf32, #tpu.memory_space<vmem>>, vector<1x128xf32>
    %137 = vector.broadcast %136 : vector<1x128xf32> to vector<32x128xf32>
    %138 = arith.addf %135, %137 : vector<32x128xf32>
    %139 = arith.addf %128, %138 : vector<32x128xf32>
    %cst_120 = arith.constant 0.000000e+00 : f32
    %140 = vector.broadcast %cst_120 : f32 to vector<32x128xf32>
    %141 = arith.maximumf %139, %140 : vector<32x128xf32>
    %142 = vector.shape_cast %141 : vector<32x128xf32> to vector<2x16x128xf32>
    %c0_121 = arith.constant 0 : index
    %c0_122 = arith.constant 0 : index
    %c0_123 = arith.constant 0 : index
    %143 = vector.load %arg11[%c0_121, %c0_122, %c0_123] : memref<2x16x128xf32, #tpu.memory_space<vmem>>, vector<2x16x128xf32>
    tpu.vector_store %arg11[%c0_121, %c0_122, %c0_123], %142 {strides = array<i32>} : memref<2x16x128xf32, #tpu.memory_space<vmem>>, vector<2x16x128xf32>,
    return
  }
  func.func @transform_0(%arg0: i32) -> (i32, i32, i32) {
    %c0_i32 = arith.constant 0 : i32
    %c0_i32_0 = arith.constant 0 : i32
    %c0_i32_1 = arith.constant 0 : i32
    return %arg0, %c0_i32, %c0_i32_0 : i32, i32, i32
  }
  func.func @transform_1(%arg0: i32) -> (i32, i32) {
    %c0_i32 = arith.constant 0 : i32
    %c0_i32_0 = arith.constant 0 : i32
    %c0_i32_1 = arith.constant 0 : i32
    return %c0_i32, %c0_i32_0 : i32, i32
  }
  func.func @transform_2(%arg0: i32) -> (i32, i32) {
    %c0_i32 = arith.constant 0 : i32
    %c0_i32_0 = arith.constant 0 : i32
    %c0_i32_1 = arith.constant 0 : i32
    return %c0_i32, %c0_i32_0 : i32, i32
  }
  func.func @transform_3(%arg0: i32) -> (i32, i32) {
    %c0_i32 = arith.constant 0 : i32
    %c0_i32_0 = arith.constant 0 : i32
    %c0_i32_1 = arith.constant 0 : i32
    return %c0_i32, %c0_i32_0 : i32, i32
  }
  func.func @transform_4(%arg0: i32) -> (i32, i32) {
    %c0_i32 = arith.constant 0 : i32
    %c0_i32_0 = arith.constant 0 : i32
    %c0_i32_1 = arith.constant 0 : i32
    return %c0_i32, %c0_i32_0 : i32, i32
  }
  func.func @transform_5(%arg0: i32) -> (i32, i32) {
    %c0_i32 = arith.constant 0 : i32
    %c0_i32_0 = arith.constant 0 : i32
    %c0_i32_1 = arith.constant 0 : i32
    return %c0_i32, %c0_i32_0 : i32, i32
  }
  func.func @transform_6(%arg0: i32) -> (i32, i32) {
    %c0_i32 = arith.constant 0 : i32
    %c0_i32_0 = arith.constant 0 : i32
    %c0_i32_1 = arith.constant 0 : i32
    return %c0_i32, %c0_i32_0 : i32, i32
  }
  func.func @transform_7(%arg0: i32) -> (i32, i32) {
    %c0_i32 = arith.constant 0 : i32
    %c0_i32_0 = arith.constant 0 : i32
    %c0_i32_1 = arith.constant 0 : i32
    return %c0_i32, %c0_i32_0 : i32, i32
  }
  func.func @transform_8(%arg0: i32) -> (i32, i32) {
    %c0_i32 = arith.constant 0 : i32
    %c0_i32_0 = arith.constant 0 : i32
    %c0_i32_1 = arith.constant 0 : i32
    return %c0_i32, %c0_i32_0 : i32, i32
  }
  func.func @transform_9(%arg0: i32) -> (i32, i32) {
    %c0_i32 = arith.constant 0 : i32
    %c0_i32_0 = arith.constant 0 : i32
    %c0_i32_1 = arith.constant 0 : i32
    return %c0_i32, %c0_i32_0 : i32, i32
  }
  func.func @transform_10(%arg0: i32) -> (i32, i32, i32) {
    %c0_i32 = arith.constant 0 : i32
    %c0_i32_0 = arith.constant 0 : i32
    %c0_i32_1 = arith.constant 0 : i32
    return %arg0, %c0_i32, %c0_i32_0 : i32, i32, i32
  }
}

</mosaic_0001>

<llo_original>
// kernel: tpu_custom_call.1
$region0: #{tpu_custom_call.1}
  #allocation0 [shape = 'u32[]', space=smem, size = 0x4, offset = 0x4, fixed_abs, tag = 'smem constant byte address 0x4 - core index']
  #allocation1 [shape = 'u32[144,128]{1,0:T(1,128)}', space=vmem, size = 0x12000, scoped, tag = 'internal scratch']
  #allocation2 [shape = 'bf16[32,896]{1,0:T(16,128)(2,1)}', space=vmem, size = 0xe000, scoped, tag = 'scratch operand']
  #allocation3 [shape = 'bf16[32,896]{1,0:T(16,128)(2,1)}', space=vmem, size = 0xe000, scoped, tag = 'scratch operand']
  %s0 = inlined_call_operand.hbm [shape: bf16[4,16,128], index: 0, kind: input, shape index: {}]
  %s1 = inlined_call_operand.hbm [shape: bf16[896,128], index: 1, kind: input, shape index: {}]
  %s2 = inlined_call_operand.vmem [shape: f32[1,128], index: 2, kind: input, shape index: {}]
  %s3 = inlined_call_operand.vmem [shape: f32[1,128], index: 3, kind: input, shape index: {}]
  %s4 = inlined_call_operand.hbm [shape: bf16[896,128], index: 4, kind: input, shape index: {}]
  %s5 = inlined_call_operand.vmem [shape: f32[1,128], index: 5, kind: input, shape index: {}]
  %s6 = inlined_call_operand.vmem [shape: f32[1,128], index: 6, kind: input, shape index: {}]
  %s7 = inlined_call_operand.hbm [shape: bf16[128,128], index: 7, kind: input, shape index: {}]
  %s8 = inlined_call_operand.vmem [shape: f32[1,128], index: 8, kind: input, shape index: {}]
  %s9 = inlined_call_operand.vmem [shape: f32[1,128], index: 9, kind: input, shape index: {}]
  %s10 = inlined_call_operand.hbm [shape: f32[4,16,128], index: 10, kind: output, shape index: {}]
  %s11 = sld [smem:[#allocation0]]
  $region89: #{tpu_custom_call.1} parent=0
    _
  %s13 = ssub.s32 1, %s11
  %s14 = scalar_select 0, %s13, %s11
  $region1: #{tpu_custom_call.1} parent=0
    #allocation4 [shape = 'u8[16384]{0}', space=vmem, size = 0x4000, scoped, tag = 'input window, operand 0']
    #allocation5 [shape = 's32[2]{0}', space=sflag, size = 0x8, scoped, tag = 'scoped memory for tpu_custom_call.1']
    #allocation6 [shape = 's32[2]{0}', space=sflag, size = 0x8, scoped, tag = 'scoped memory for tpu_custom_call.1']
    #allocation7 [shape = 'u8[229376]{0}', space=vmem, size = 0x38000, scoped, tag = 'input window, operand 1, single buffered']
    #allocation8 [shape = 's32[1]{0}', space=sflag, size = 0x4, scoped, tag = 'scoped memory for tpu_custom_call.1']
    #allocation9 [shape = 'u8[229376]{0}', space=vmem, size = 0x38000, scoped, tag = 'input window, operand 4, single buffered']
    #allocation10 [shape = 'u8[32768]{0}', space=vmem, size = 0x8000, scoped, tag = 'input window, operand 7, single buffered']
    #allocation11 [shape = 's32[1]{0}', space=sflag, size = 0x4, scoped, tag = 'scoped memory for tpu_custom_call.1']
    #allocation12 [shape = 'u8[32768]{0}', space=vmem, size = 0x8000, scoped, tag = 'output window, operand 0']
    %15 = vsyncpa [#allocation5], 0
    %s16 = scalar_lea.sflag [#allocation5], 1
    %17 = vsyncpa %s16, 0
    %18 = vsyncpa [#allocation8], 0
    %19 = vsyncpa [#allocation11], 0
    %20 = vsyncpa [#allocation6], 0
    %s21 = scalar_lea.sflag [#allocation6], 1
    %22 = vsyncpa %s21, 0
    loop: start=0, step=1, limit=4
    $region2: #{tpu_custom_call.1} parent=1 // loop_pre_header
      _
    $region3: #{tpu_custom_call.1} parent=1 // loop_header
      %s24 = sphi 0, %s28
      %p25 = scmp.ge.s32.totalorder %s24, 4
      %s34 = sphi 0, %s36
      %s37 = sphi 0, %s34
      %s38 = sphi 0, %s37
      %s54 = sphi 0, %s38
      %s58 = sphi 0, %s58
      %s60 = sphi 0, %s58
      %s61 = sphi 0, %s60
      %s75 = sphi 0, %s61
      %s79 = sphi 0, %s79
      %s81 = sphi 0, %s79
      %s82 = sphi 0, %s81
      %s96 = sphi 0, %s82
      %s100 = sphi 0, %s100
      %s102 = sphi 0, %s100
      %s103 = sphi 0, %s102
      %s117 = sphi 0, %s103
      %s121 = sphi 0, %s121
      %s123 = sphi 0, %s121
      %s124 = sphi 0, %s123
      %s138 = sphi 0, %s124
      %s142 = sphi 0, %s142
      %s144 = sphi 0, %s142
      %s145 = sphi 0, %s144
      %s159 = sphi 0, %s145
      %s163 = sphi 0, %s163
      %s165 = sphi 0, %s163
      %s166 = sphi 0, %s165
      %s180 = sphi 0, %s166
      %s184 = sphi 0, %s184
      %s186 = sphi 0, %s184
      %s187 = sphi 0, %s186
      %s201 = sphi 0, %s187
      %s205 = sphi 0, %s205
      %s207 = sphi 0, %s205
      %s208 = sphi 0, %s207
      %s222 = sphi 0, %s208
      %s226 = sphi 0, %s226
      %s228 = sphi 0, %s226
      %s229 = sphi 0, %s228
      %s243 = sphi 0, %s229
      %s249 = sphi 0, %s251
      %s252 = sphi 0, %s249
      %s253 = sphi 0, %s252
      %s269 = sphi 0, %s253
    $region4: #{tpu_custom_call.1} parent=1 // loop_header_branch
      %27 = sbr.rel (%p25) target = $region8
    $region5: #{tpu_custom_call.1} parent=1 // loop_body
      %s29 = ssub.s32 %s24, 1
      %s30 = ssub.s32 %s24, 2
      %s31 = sadd.s32 %s24, 1
      %s32 = ssub.s32 %s24, %s31
      %p33 = scmp.eq.s32.totalorder %s32, 0
      %s35 = sadd.s32 %s34, 1
      %s36 = scalar_select %p33, %s34, %s35
      %p39 = pneg %p33
      %p40 = scmp.eq.s32.totalorder %s24, 1
      %p41 = por %p39, %p40
      %p42 = scmp.ne.s32.totalorder %s34, %s37
      %p43 = scmp.eq.s32.totalorder %s24, 0
      %p44 = por %p42, %p43
      %p45 = scmp.ne.s32.totalorder %s34, %s37
      %p46 = scmp.eq.s32.totalorder %s29, 1
      %p47 = por %p45, %p46
      %p48 = scmp.ne.s32.totalorder %s37, %s38
      %p49 = scmp.eq.s32.totalorder %s29, 0
      %p50 = por %p48, %p49
      %p51 = scmp.ne.s32.totalorder %s37, %s38
      %p52 = scmp.eq.s32.totalorder %s30, 1
      %p53 = por %p51, %p52
      %p55 = scmp.ne.s32.totalorder %s38, %s54
      %p56 = scmp.eq.s32.totalorder %s30, 0
      %p57 = por %p55, %p56
      %s59 = sadd.s32 %s58, 1
      %p62 = scmp.eq.s32.totalorder %s24, 1
      %p63 = scmp.ne.s32.totalorder %s58, %s60
      %p64 = scmp.eq.s32.totalorder %s24, 0
      %p65 = por %p63, %p64
      %p66 = scmp.ne.s32.totalorder %s58, %s60
      %p67 = scmp.eq.s32.totalorder %s29, 1
      %p68 = por %p66, %p67
      %p69 = scmp.ne.s32.totalorder %s60, %s61
      %p70 = scmp.eq.s32.totalorder %s29, 0
      %p71 = por %p69, %p70
      %p72 = scmp.ne.s32.totalorder %s60, %s61
      %p73 = scmp.eq.s32.totalorder %s30, 1
      %p74 = por %p72, %p73
      %p76 = scmp.ne.s32.totalorder %s61, %s75
      %p77 = scmp.eq.s32.totalorder %s30, 0
      %p78 = por %p76, %p77
      %s80 = sadd.s32 %s79, 1
      %p83 = scmp.eq.s32.totalorder %s24, 1
      %p84 = scmp.ne.s32.totalorder %s79, %s81
      %p85 = scmp.eq.s32.totalorder %s24, 0
      %p86 = por %p84, %p85
      %p87 = scmp.ne.s32.totalorder %s79, %s81
      %p88 = scmp.eq.s32.totalorder %s29, 1
      %p89 = por %p87, %p88
      %p90 = scmp.ne.s32.totalorder %s81, %s82
      %p91 = scmp.eq.s32.totalorder %s29, 0
      %p92 = por %p90, %p91
      %p93 = scmp.ne.s32.totalorder %s81, %s82
      %p94 = scmp.eq.s32.totalorder %s30, 1
      %p95 = por %p93, %p94
      %p97 = scmp.ne.s32.totalorder %s82, %s96
      %p98 = scmp.eq.s32.totalorder %s30, 0
      %p99 = por %p97, %p98
      %s101 = sadd.s32 %s100, 1
      %p104 = scmp.eq.s32.totalorder %s24, 1
      %p105 = scmp.ne.s32.totalorder %s100, %s102
      %p106 = scmp.eq.s32.totalorder %s24, 0
      %p107 = por %p105, %p106
      %p108 = scmp.ne.s32.totalorder %s100, %s102
      %p109 = scmp.eq.s32.totalorder %s29, 1
      %p110 = por %p108, %p109
      %p111 = scmp.ne.s32.totalorder %s102, %s103
      %p112 = scmp.eq.s32.totalorder %s29, 0
      %p113 = por %p111, %p112
      %p114 = scmp.ne.s32.totalorder %s102, %s103
      %p115 = scmp.eq.s32.totalorder %s30, 1
      %p116 = por %p114, %p115
      %p118 = scmp.ne.s32.totalorder %s103, %s117
      %p119 = scmp.eq.s32.totalorder %s30, 0
      %p120 = por %p118, %p119
      %s122 = sadd.s32 %s121, 1
      %p125 = scmp.eq.s32.totalorder %s24, 1
      %p126 = scmp.ne.s32.totalorder %s121, %s123
      %p127 = scmp.eq.s32.totalorder %s24, 0
      %p128 = por %p126, %p127
      %p129 = scmp.ne.s32.totalorder %s121, %s123
      %p130 = scmp.eq.s32.totalorder %s29, 1
      %p131 = por %p129, %p130
      %p132 = scmp.ne.s32.totalorder %s123, %s124
      %p133 = scmp.eq.s32.totalorder %s29, 0
      %p134 = por %p132, %p133
      %p135 = scmp.ne.s32.totalorder %s123, %s124
      %p136 = scmp.eq.s32.totalorder %s30, 1
      %p137 = por %p135, %p136
      %p139 = scmp.ne.s32.totalorder %s124, %s138
      %p140 = scmp.eq.s32.totalorder %s30, 0
      %p141 = por %p139, %p140
      %s143 = sadd.s32 %s142, 1
      %p146 = scmp.eq.s32.totalorder %s24, 1
      %p147 = scmp.ne.s32.totalorder %s142, %s144
      %p148 = scmp.eq.s32.totalorder %s24, 0
      %p149 = por %p147, %p148
      %p150 = scmp.ne.s32.totalorder %s142, %s144
      %p151 = scmp.eq.s32.totalorder %s29, 1
      %p152 = por %p150, %p151
      %p153 = scmp.ne.s32.totalorder %s144, %s145
      %p154 = scmp.eq.s32.totalorder %s29, 0
      %p155 = por %p153, %p154
      %p156 = scmp.ne.s32.totalorder %s144, %s145
      %p157 = scmp.eq.s32.totalorder %s30, 1
      %p158 = por %p156, %p157
      %p160 = scmp.ne.s32.totalorder %s145, %s159
      %p161 = scmp.eq.s32.totalorder %s30, 0
      %p162 = por %p160, %p161
      %s164 = sadd.s32 %s163, 1
      %p167 = scmp.eq.s32.totalorder %s24, 1
      %p168 = scmp.ne.s32.totalorder %s163, %s165
      %p169 = scmp.eq.s32.totalorder %s24, 0
      %p170 = por %p168, %p169
      %p171 = scmp.ne.s32.totalorder %s163, %s165
      %p172 = scmp.eq.s32.totalorder %s29, 1
      %p173 = por %p171, %p172
      %p174 = scmp.ne.s32.totalorder %s165, %s166
      %p175 = scmp.eq.s32.totalorder %s29, 0
      %p176 = por %p174, %p175
      %p177 = scmp.ne.s32.totalorder %s165, %s166
      %p178 = scmp.eq.s32.totalorder %s30, 1
      %p179 = por %p177, %p178
      %p181 = scmp.ne.s32.totalorder %s166, %s180
      %p182 = scmp.eq.s32.totalorder %s30, 0
      %p183 = por %p181, %p182
      %s185 = sadd.s32 %s184, 1
      %p188 = scmp.eq.s32.totalorder %s24, 1
      %p189 = scmp.ne.s32.totalorder %s184, %s186
      %p190 = scmp.eq.s32.totalorder %s24, 0
      %p191 = por %p189, %p190
      %p192 = scmp.ne.s32.totalorder %s184, %s186
      %p193 = scmp.eq.s32.totalorder %s29, 1
      %p194 = por %p192, %p193
      %p195 = scmp.ne.s32.totalorder %s186, %s187
      %p196 = scmp.eq.s32.totalorder %s29, 0
      %p197 = por %p195, %p196
      %p198 = scmp.ne.s32.totalorder %s186, %s187
      %p199 = scmp.eq.s32.totalorder %s30, 1
      %p200 = por %p198, %p199
      %p202 = scmp.ne.s32.totalorder %s187, %s201
      %p203 = scmp.eq.s32.totalorder %s30, 0
      %p204 = por %p202, %p203
      %s206 = sadd.s32 %s205, 1
      %p209 = scmp.eq.s32.totalorder %s24, 1
      %p210 = scmp.ne.s32.totalorder %s205, %s207
      %p211 = scmp.eq.s32.totalorder %s24, 0
      %p212 = por %p210, %p211
      %p213 = scmp.ne.s32.totalorder %s205, %s207
      %p214 = scmp.eq.s32.totalorder %s29, 1
      %p215 = por %p213, %p214
      %p216 = scmp.ne.s32.totalorder %s207, %s208
      %p217 = scmp.eq.s32.totalorder %s29, 0
      %p218 = por %p216, %p217
      %p219 = scmp.ne.s32.totalorder %s207, %s208
      %p220 = scmp.eq.s32.totalorder %s30, 1
      %p221 = por %p219, %p220
      %p223 = scmp.ne.s32.totalorder %s208, %s222
      %p224 = scmp.eq.s32.totalorder %s30, 0
      %p225 = por %p223, %p224
      %s227 = sadd.s32 %s226, 1
      %p230 = scmp.eq.s32.totalorder %s24, 1
      %p231 = scmp.ne.s32.totalorder %s226, %s228
      %p232 = scmp.eq.s32.totalorder %s24, 0
      %p233 = por %p231, %p232
      %p234 = scmp.ne.s32.totalorder %s226, %s228
      %p235 = scmp.eq.s32.totalorder %s29, 1
      %p236 = por %p234, %p235
      %p237 = scmp.ne.s32.totalorder %s228, %s229
      %p238 = scmp.eq.s32.totalorder %s29, 0
      %p239 = por %p237, %p238
      %p240 = scmp.ne.s32.totalorder %s228, %s229
      %p241 = scmp.eq.s32.totalorder %s30, 1
      %p242 = por %p240, %p241
      %p244 = scmp.ne.s32.totalorder %s229, %s243
      %p245 = scmp.eq.s32.totalorder %s30, 0
      %p246 = por %p244, %p245
      %s247 = ssub.s32 %s24, %s31
      %p248 = scmp.eq.s32.totalorder %s247, 0
      %s250 = sadd.s32 %s249, 1
      %s251 = scalar_select %p248, %s249, %s250
      %p254 = pneg %p248
      %p255 = scmp.eq.s32.totalorder %s24, 1
      %p256 = por %p254, %p255
      %p257 = scmp.ne.s32.totalorder %s249, %s252
      %p258 = scmp.eq.s32.totalorder %s24, 0
      %p259 = por %p257, %p258
      %p260 = scmp.ne.s32.totalorder %s249, %s252
      %p261 = scmp.eq.s32.totalorder %s29, 1
      %p262 = por %p260, %p261
      %p263 = scmp.ne.s32.totalorder %s252, %s253
      %p264 = scmp.eq.s32.totalorder %s29, 0
      %p265 = por %p263, %p264
      %p266 = scmp.ne.s32.totalorder %s252, %s253
      %p267 = scmp.eq.s32.totalorder %s30, 1
      %p268 = por %p266, %p267
      %p270 = scmp.ne.s32.totalorder %s253, %s269
      %p271 = scmp.eq.s32.totalorder %s30, 0
      %p272 = por %p270, %p271
      %p273 = scmp.le.s32.totalorder 1, %s24
      %p274 = scmp.lt.s32.totalorder %s24, 3
      %p275 = pnand %p273, %p274
      %p276 = pneg %p275
      // Predicated region
      $region9: #{tpu_custom_call.1} parent=5 // pred_check
        _
      $region10: #{tpu_custom_call.1} parent=5 // pred_check_branch
        %278 = sbr.rel (%p275) target = $region12
      $region11: #{tpu_custom_call.1} parent=5 // pred_region
        %s279 = ssub.s32 %s24, 1
        // Predicated region
        $region13: #{tpu_custom_call.1} parent=11 // pred_check
          %p280 = pneg %p71
        $region14: #{tpu_custom_call.1} parent=11 // pred_check_branch
          %282 = sbr.rel (%p280) target = $region16
        $region15: #{tpu_custom_call.1} parent=11 // pred_region
          %s284 = ssub.s32 7168, 7168
          %285 = vsyncadd [#allocation8], %s284
          %s286 = sshll.u32 [#allocation7], 4
          %s287 = int_to_ptr.vmem [resolvable:$true] %s286
          %292 = dma.hbm_to_vmem [thread:$0]  %s1, 7168, %s287, [#allocation8], 64, 64, 4
        $region16: #{tpu_custom_call.1} parent=11 // pred_fallthru
          _
        // Predicated region
        $region17: #{tpu_custom_call.1} parent=11 // pred_check
          %p293 = pneg %p92
        $region18: #{tpu_custom_call.1} parent=11 // pred_check_branch
          %295 = sbr.rel (%p293) target = $region20
        $region19: #{tpu_custom_call.1} parent=11 // pred_region
          _
        $region20: #{tpu_custom_call.1} parent=11 // pred_fallthru
          _
        // Predicated region
        $region21: #{tpu_custom_call.1} parent=11 // pred_check
          %p296 = pneg %p113
        $region22: #{tpu_custom_call.1} parent=11 // pred_check_branch
          %298 = sbr.rel (%p296) target = $region24
        $region23: #{tpu_custom_call.1} parent=11 // pred_region
          _
        $region24: #{tpu_custom_call.1} parent=11 // pred_fallthru
          _
        // Predicated region
        $region25: #{tpu_custom_call.1} parent=11 // pred_check
          %p299 = pneg %p134
        $region26: #{tpu_custom_call.1} parent=11 // pred_check_branch
          %301 = sbr.rel (%p299) target = $region28
        $region27: #{tpu_custom_call.1} parent=11 // pred_region
          %s303 = ssub.s32 7168, 7168
          %304 = vsyncadd [#allocation8], %s303
          %s305 = sshll.u32 [#allocation9], 4
          %s306 = int_to_ptr.vmem [resolvable:$true] %s305
          %311 = dma.hbm_to_vmem [thread:$0]  %s4, 7168, %s306, [#allocation8], 64, 64, 4
        $region28: #{tpu_custom_call.1} parent=11 // pred_fallthru
          _
        // Predicated region
        $region29: #{tpu_custom_call.1} parent=11 // pred_check
          %p312 = pneg %p155
        $region30: #{tpu_custom_call.1} parent=11 // pred_check_branch
          %314 = sbr.rel (%p312) target = $region32
        $region31: #{tpu_custom_call.1} parent=11 // pred_region
          _
        $region32: #{tpu_custom_call.1} parent=11 // pred_fallthru
          _
        // Predicated region
        $region33: #{tpu_custom_call.1} parent=11 // pred_check
          %p315 = pneg %p176
        $region34: #{tpu_custom_call.1} parent=11 // pred_check_branch
          %317 = sbr.rel (%p315) target = $region36
        $region35: #{tpu_custom_call.1} parent=11 // pred_region
          _
        $region36: #{tpu_custom_call.1} parent=11 // pred_fallthru
          _
        // Predicated region
        $region37: #{tpu_custom_call.1} parent=11 // pred_check
          %p318 = pneg %p197
        $region38: #{tpu_custom_call.1} parent=11 // pred_check_branch
          %320 = sbr.rel (%p318) target = $region40
        $region39: #{tpu_custom_call.1} parent=11 // pred_region
          %s322 = ssub.s32 1024, 1024
          %323 = vsyncadd [#allocation11], %s322
          %s324 = sshll.u32 [#allocation10], 4
          %s325 = int_to_ptr.vmem [resolvable:$true] %s324
          %330 = dma.hbm_to_vmem [thread:$0]  %s7, 1024, %s325, [#allocation11], 64, 64, 4
        $region40: #{tpu_custom_call.1} parent=11 // pred_fallthru
          _
        // Predicated region
        $region41: #{tpu_custom_call.1} parent=11 // pred_check
          %p331 = pneg %p218
        $region42: #{tpu_custom_call.1} parent=11 // pred_check_branch
          %333 = sbr.rel (%p331) target = $region44
        $region43: #{tpu_custom_call.1} parent=11 // pred_region
          _
        $region44: #{tpu_custom_call.1} parent=11 // pred_fallthru
          _
        // Predicated region
        $region45: #{tpu_custom_call.1} parent=11 // pred_check
          %p334 = pneg %p239
        $region46: #{tpu_custom_call.1} parent=11 // pred_check_branch
          %336 = sbr.rel (%p334) target = $region48
        $region47: #{tpu_custom_call.1} parent=11 // pred_region
          _
        $region48: #{tpu_custom_call.1} parent=11 // pred_fallthru
          _
      $region12: #{tpu_custom_call.1} parent=5 // pred_fallthru
        _
      %p337 = scmp.lt.s32.totalorder %s24, 2
      // Predicated region
      $region49: #{tpu_custom_call.1} parent=5 // pred_check
        %p338 = pneg %p337
      $region50: #{tpu_custom_call.1} parent=5 // pred_check_branch
        %340 = sbr.rel (%p338) target = $region52
      $region51: #{tpu_custom_call.1} parent=5 // pred_region
        // Predicated region
        $region53: #{tpu_custom_call.1} parent=51 // pred_check
          %p341 = pneg %p44
        $region54: #{tpu_custom_call.1} parent=51 // pred_check_branch
          %343 = sbr.rel (%p341) target = $region56
        $region55: #{tpu_custom_call.1} parent=51 // pred_region
          %s344 = sand.u32 %s34, 1
          %s345 = scalar_lea.sflag [#allocation5], %s344
          %s346 = sand.u32 %s34, 1
          %s347 = smul.addr %s346, 16
          %s348 = scalar_lea.vmem [#allocation4], %s347
          %s349 = smul.u32 2, %s24
          %s351 = ssub.s32 256, 256
          %352 = vsyncadd %s345, %s351
          %s353 = smul.addr %s349, 2
          %s354 = smul.addr %s353, 64
          %s355 = scalar_lea.hbm %s0, %s354
          %s356 = sshll.u32 %s348, 4
          %s357 = int_to_ptr.vmem [resolvable:$true] %s356
          %362 = dma.hbm_to_vmem [thread:$0]  %s355, 256, %s357, %s345, 64, 64, 4
        $region56: #{tpu_custom_call.1} parent=51 // pred_fallthru
          _
      $region52: #{tpu_custom_call.1} parent=5 // pred_fallthru
        _
      %p363 = scmp.le.s32.totalorder 1, %s24
      %p364 = scmp.lt.s32.totalorder %s24, 3
      %p365 = pnand %p363, %p364
      %p366 = pneg %p365
      // Predicated region
      $region57: #{tpu_custom_call.1} parent=5 // pred_check
        _
      $region58: #{tpu_custom_call.1} parent=5 // pred_check_branch
        %368 = sbr.rel (%p365) target = $region60
      $region59: #{tpu_custom_call.1} parent=5 // pred_region
        %s369 = ssub.s32 %s24, 1
        %s370 = sand.u32 %s37, 1
        %s371 = scalar_lea.sflag [#allocation5], %s370
        %s372 = sand.u32 %s37, 1
        %s373 = smul.addr %s372, 16
        %s374 = scalar_lea.vmem [#allocation4], %s373
        // Predicated region
        $region61: #{tpu_custom_call.1} parent=59 // pred_check
          %p375 = pneg %p50
        $region62: #{tpu_custom_call.1} parent=59 // pred_check_branch
          %377 = sbr.rel (%p375) target = $region64
        $region63: #{tpu_custom_call.1} parent=59 // pred_region
          %378 = dma.done %s371, 256
        $region64: #{tpu_custom_call.1} parent=59 // pred_fallthru
          _
        // Predicated region
        $region65: #{tpu_custom_call.1} parent=59 // pred_check
          %p379 = pneg %p71
        $region66: #{tpu_custom_call.1} parent=59 // pred_check_branch
          %381 = sbr.rel (%p379) target = $region68
        $region67: #{tpu_custom_call.1} parent=59 // pred_region
          %382 = dma.done [#allocation8], 7168
        $region68: #{tpu_custom_call.1} parent=59 // pred_fallthru
          _
        // Predicated region
        $region69: #{tpu_custom_call.1} parent=59 // pred_check
          %p383 = pneg %p134
        $region70: #{tpu_custom_call.1} parent=59 // pred_check_branch
          %385 = sbr.rel (%p383) target = $region72
        $region71: #{tpu_custom_call.1} parent=59 // pred_region
          %386 = dma.done [#allocation8], 7168
        $region72: #{tpu_custom_call.1} parent=59 // pred_fallthru
          _
        // Predicated region
        $region73: #{tpu_custom_call.1} parent=59 // pred_check
          %p387 = pneg %p197
        $region74: #{tpu_custom_call.1} parent=59 // pred_check_branch
          %389 = sbr.rel (%p387) target = $region76
        $region75: #{tpu_custom_call.1} parent=59 // pred_region
          %390 = dma.done [#allocation11], 1024
        $region76: #{tpu_custom_call.1} parent=59 // pred_fallthru
          _
        %s391 = sand.u32 %s37, 1
        %s392 = scalar_lea.sflag [#allocation5], %s391
        %s393 = sand.u32 %s37, 1
        %s394 = smul.addr %s393, 16
        %s395 = scalar_lea.vmem [#allocation4], %s394
        %p396 = pneg %p50
        %p397 = pneg %p47
        %p398 = pneg %p71
        %p399 = pneg %p68
        %p400 = pneg %p92
        %p401 = pneg %p89
        %p402 = pneg %p113
        %p403 = pneg %p110
        %p404 = pneg %p134
        %p405 = pneg %p131
        %p406 = pneg %p155
        %p407 = pneg %p152
        %p408 = pneg %p176
        %p409 = pneg %p173
        %p410 = pneg %p197
        %p411 = pneg %p194
        %p412 = pneg %p218
        %p413 = pneg %p215
        %p414 = pneg %p239
        %p415 = pneg %p236
        %p416 = pneg %p265
        %p417 = pneg %p262
        %s418 = sand.u32 %s252, 1
        %s419 = scalar_lea.sflag [#allocation6], %s418
        %s420 = sand.u32 %s252, 1
        %s421 = smul.addr %s420, 32
        %s422 = scalar_lea.vmem [#allocation12], %s421
        %s423 = smul.u32 2, %s29
        %s424 = smul.u32 2, %s29
        %v426 = vld [vmem:[%s2] sm:$0x1]
        %v427 = vld [vmem:[%s3] sm:$0x1]
        %v428 = vld [vmem:[%s5] sm:$0x1]
        %v429 = vld [vmem:[%s6] sm:$0x1]
        %v430 = vld [vmem:[%s374] sm:$0xf]
        %v431 = vld [vmem:[%s374 + $0x4] sm:$0xf]
        %vm432 = vcmask 1041408
        %vm433 = vsmask.f32 1280
        %vm434 = vmand %vm432, %vm433
        %v435 = vld [vmem:[#allocation2] sm:$0x3]
        %v436 = vsel %vm434, 0, %v435
        %437 = vst [vmem:[#allocation2] sm:$0x3] %v436
        %v440 = vunpack.c.l.b16 %v430
        %v441 = vunpack.c.l.b16 %v431
        %v442 = vpack.c.b16 %v441, %v440
        %v444 = vshrl.u32 %v442, 16
        %v446 = vrot.slane %v444, 6
        %v447 = vshll.u32 %v442, 16
        %v449 = vrot.slane %v447, 7
        %v450 = vor.u32 %v446, %v449
        %vm452 = vcmask 1047553
        %vm453 = vsmask.f32 7942
        %vm454 = vmand %vm452, %vm453
        %v455 = vld [vmem:[#allocation2] sm:$0xfe]
        %v456 = vsel %vm454, %v450, %v455
        %457 = vst [vmem:[#allocation2] sm:$0xfe] %v456
        %458 = vst [vmem:[#allocation2 + $0x8] sm:$0x1] 0
        %v459 = vrot.slane %v442, 7
        %461 = vst [vmem:[#allocation2 + $0x8] sm:$0xfe] %v459
        %vm462 = vcmask 1040384
        %vm463 = vsmask.f32 256
        %vm464 = vmand %vm462, %vm463
        %v465 = vld [vmem:[#allocation2 + $0x10] sm:$0x1]
        %v466 = vsel %vm464, 0, %v465
        %467 = vst [vmem:[#allocation2 + $0x10] sm:$0x1] %v466
        %v468 = vrot.slane %v444, 7
        %v469 = vor.u32 %v468, %v447
        %vm471 = vcmask 1047552
        %vm472 = vsmask.f32 7938
        %vm473 = vmand %vm471, %vm472
        %v474 = vld [vmem:[#allocation2 + $0x10] sm:$0xff]
        %v475 = vsel %vm473, %v469, %v474
        %476 = vst [vmem:[#allocation2 + $0x10] sm:$0xff] %v475
        %478 = vst [vmem:[#allocation2 + $0x18] sm:$0xff] %v442
        %vm479 = vcmask 1047559
        %vm480 = vsmask.f32 7966
        %vm481 = vmand %vm479, %vm480
        %v482 = vld [vmem:[#allocation2 + $0x20] sm:$0x80]
        %v483 = vsel %vm481, 0, %v482
        %484 = vst [vmem:[#allocation2 + $0x20] sm:$0x80] %v483
        %v485 = vrot.slane %v447, 1
        %v486 = vor.u32 %v444, %v485
        %vm488 = vsmask.f32 7424
        %vm489 = vmand %vm471, %vm488
        %v490 = vld [vmem:[#allocation2 + $0x20] sm:$0xff]
        %v491 = vsel %vm489, %v486, %v490
        %492 = vst [vmem:[#allocation2 + $0x20] sm:$0xff] %v491
        %493 = vst [vmem:[#allocation2 + $0x28] sm:$0x80] 0
        %v494 = vrot.slane %v442, 1
        %496 = vst [vmem:[#allocation2 + $0x28] sm:$0x7f] %v494
        %vm497 = vcmask 1047558
        %vm498 = vsmask.f32 7962
        %vm499 = vmand %vm497, %vm498
        %v500 = vld [vmem:[#allocation2 + $0x30] sm:$0xc0]
        %v501 = vsel %vm499, 0, %v500
        %502 = vst [vmem:[#allocation2 + $0x30] sm:$0xc0] %v501
        %v503 = vrot.slane %v444, 1
        %v504 = vrot.slane %v447, 2
        %v505 = vor.u32 %v503, %v504
        %vm507 = vcmask 1046528
        %vm508 = vsmask.f32 6400
        %vm509 = vmand %vm507, %vm508
        %v510 = vld [vmem:[#allocation2 + $0x30] sm:$0x7f]
        %v511 = vsel %vm509, %v505, %v510
        %512 = vst [vmem:[#allocation2 + $0x30] sm:$0x7f] %v511
        %s513 = scalar_lea.vmem %s374, 8 [#allocation4]
        %v514 = vld [vmem:[%s513] sm:$0xf]
        %v515 = vld [vmem:[%s513 + $0x4] sm:$0xf]
        %v516 = vld [vmem:[#allocation2 + $0x38] sm:$0x3]
        %v517 = vsel %vm434, 0, %v516
        %518 = vst [vmem:[#allocation2 + $0x38] sm:$0x3] %v517
        %v521 = vunpack.c.l.b16 %v514
        %v522 = vunpack.c.l.b16 %v515
        %v523 = vpack.c.b16 %v522, %v521
        %v525 = vshrl.u32 %v523, 16
        %v527 = vrot.slane %v525, 6
        %v528 = vshll.u32 %v523, 16
        %v530 = vrot.slane %v528, 7
        %v531 = vor.u32 %v527, %v530
        %v533 = vld [vmem:[#allocation2 + $0x38] sm:$0xfe]
        %v534 = vsel %vm454, %v531, %v533
        %535 = vst [vmem:[#allocation2 + $0x38] sm:$0xfe] %v534
        %536 = vst [vmem:[#allocation2 + $0x40] sm:$0x1] 0
        %v537 = vrot.slane %v523, 7
        %539 = vst [vmem:[#allocation2 + $0x40] sm:$0xfe] %v537
        %v540 = vld [vmem:[#allocation2 + $0x48] sm:$0x1]
        %v541 = vsel %vm464, 0, %v540
        %542 = vst [vmem:[#allocation2 + $0x48] sm:$0x1] %v541
        %v543 = vrot.slane %v525, 7
        %v544 = vor.u32 %v543, %v528
        %v546 = vld [vmem:[#allocation2 + $0x48] sm:$0xff]
        %v547 = vsel %vm473, %v544, %v546
        %548 = vst [vmem:[#allocation2 + $0x48] sm:$0xff] %v547
        %550 = vst [vmem:[#allocation2 + $0x50] sm:$0xff] %v523
        %v551 = vld [vmem:[#allocation2 + $0x58] sm:$0x80]
        %v552 = vsel %vm481, 0, %v551
        %553 = vst [vmem:[#allocation2 + $0x58] sm:$0x80] %v552
        %v554 = vrot.slane %v528, 1
        %v555 = vor.u32 %v525, %v554
        %v557 = vld [vmem:[#allocation2 + $0x58] sm:$0xff]
        %v558 = vsel %vm489, %v555, %v557
        %559 = vst [vmem:[#allocation2 + $0x58] sm:$0xff] %v558
        %560 = vst [vmem:[#allocation2 + $0x60] sm:$0x80] 0
        %v561 = vrot.slane %v523, 1
        %563 = vst [vmem:[#allocation2 + $0x60] sm:$0x7f] %v561
        %v564 = vld [vmem:[#allocation2 + $0x68] sm:$0xc0]
        %v565 = vsel %vm499, 0, %v564
        %566 = vst [vmem:[#allocation2 + $0x68] sm:$0xc0] %v565
        %v567 = vrot.slane %v525, 1
        %v568 = vrot.slane %v528, 2
        %v569 = vor.u32 %v567, %v568
        %v571 = vld [vmem:[#allocation2 + $0x68] sm:$0x7f]
        %v572 = vsel %vm509, %v569, %v571
        %573 = vst [vmem:[#allocation2 + $0x68] sm:$0x7f] %v572
        %v574 = vld [vmem:[#allocation2] sm:$0xff]
        %v575 = vld [vmem:[#allocation2 + $0x8] sm:$0xff]
        %v576 = vld [vmem:[#allocation2 + $0x10] sm:$0xff]
        %v577 = vld [vmem:[#allocation2 + $0x18] sm:$0xff]
        %v578 = vld [vmem:[#allocation2 + $0x20] sm:$0xff]
        %v579 = vld [vmem:[#allocation2 + $0x28] sm:$0xff]
        %v580 = vld [vmem:[#allocation2 + $0x30] sm:$0xff]
        %v581 = vld [vmem:[#allocation2 + $0x38] sm:$0xff]
        %v582 = vld [vmem:[#allocation2 + $0x40] sm:$0xff]
        %v583 = vld [vmem:[#allocation2 + $0x48] sm:$0xff]
        %v584 = vld [vmem:[#allocation2 + $0x50] sm:$0xff]
        %v585 = vld [vmem:[#allocation2 + $0x58] sm:$0xff]
        %v586 = vld [vmem:[#allocation2 + $0x60] sm:$0xff]
        %v587 = vld [vmem:[#allocation2 + $0x68] sm:$0xff]
        %v588 = vld [vmem:[#allocation7] sm:$0xf]
        %v589 = vld [vmem:[#allocation7 + $0x4] sm:$0xf]
        %v590 = vld [vmem:[#allocation7 + $0x8] sm:$0xf]
        %v591 = vld [vmem:[#allocation7 + $0xc] sm:$0xf]
        %v592 = vld [vmem:[#allocation7 + $0x10] sm:$0xf]
        %v593 = vld [vmem:[#allocation7 + $0x14] sm:$0xf]
        %v594 = vld [vmem:[#allocation7 + $0x18] sm:$0xf]
        %v595 = vld [vmem:[#allocation7 + $0x1c] sm:$0xf]
        %v596 = vld [vmem:[#allocation7 + $0x20] sm:$0xf]
        %v597 = vld [vmem:[#allocation7 + $0x24] sm:$0xf]
        %v598 = vld [vmem:[#allocation7 + $0x28] sm:$0xf]
        %v599 = vld [vmem:[#allocation7 + $0x2c] sm:$0xf]
        %v600 = vld [vmem:[#allocation7 + $0x30] sm:$0xf]
        %v601 = vld [vmem:[#allocation7 + $0x34] sm:$0xf]
        %v602 = vld [vmem:[#allocation7 + $0x38] sm:$0xf]
        %v603 = vld [vmem:[#allocation7 + $0x3c] sm:$0xf]
        %v604 = vld [vmem:[#allocation7 + $0x40] sm:$0xf]
        %v605 = vld [vmem:[#allocation7 + $0x44] sm:$0xf]
        %v606 = vld [vmem:[#allocation7 + $0x48] sm:$0xf]
        %v607 = vld [vmem:[#allocation7 + $0x4c] sm:$0xf]
        %v608 = vld [vmem:[#allocation7 + $0x50] sm:$0xf]
        %v609 = vld [vmem:[#allocation7 + $0x54] sm:$0xf]
        %v610 = vld [vmem:[#allocation7 + $0x58] sm:$0xf]
        %v611 = vld [vmem:[#allocation7 + $0x5c] sm:$0xf]
        %v612 = vld [vmem:[#allocation7 + $0x60] sm:$0xf]
        %v613 = vld [vmem:[#allocation7 + $0x64] sm:$0xf]
        %v614 = vld [vmem:[#allocation7 + $0x68] sm:$0xf]
        %v615 = vld [vmem:[#allocation7 + $0x6c] sm:$0xf]
        %v616 = vld [vmem:[#allocation7 + $0x70] sm:$0xf]
        %v617 = vld [vmem:[#allocation7 + $0x74] sm:$0xf]
        %v618 = vld [vmem:[#allocation7 + $0x78] sm:$0xf]
        %v619 = vld [vmem:[#allocation7 + $0x7c] sm:$0xf]
        %v620 = vld [vmem:[#allocation7 + $0x80] sm:$0xf]
        %v621 = vld [vmem:[#allocation7 + $0x84] sm:$0xf]
        %v622 = vld [vmem:[#allocation7 + $0x88] sm:$0xf]
        %v623 = vld [vmem:[#allocation7 + $0x8c] sm:$0xf]
        %v624 = vld [vmem:[#allocation7 + $0x90] sm:$0xf]
        %v625 = vld [vmem:[#allocation7 + $0x94] sm:$0xf]
        %v626 = vld [vmem:[#allocation7 + $0x98] sm:$0xf]
        %v627 = vld [vmem:[#allocation7 + $0x9c] sm:$0xf]
        %v628 = vld [vmem:[#allocation7 + $0xa0] sm:$0xf]
        %v629 = vld [vmem:[#allocation7 + $0xa4] sm:$0xf]
        %v630 = vld [vmem:[#allocation7 + $0xa8] sm:$0xf]
        %v631 = vld [vmem:[#allocation7 + $0xac] sm:$0xf]
        %v632 = vld [vmem:[#allocation7 + $0xb0] sm:$0xf]
        %v633 = vld [vmem:[#allocation7 + $0xb4] sm:$0xf]
        %v634 = vld [vmem:[#allocation7 + $0xb8] sm:$0xf]
        %v635 = vld [vmem:[#allocation7 + $0xbc] sm:$0xf]
        %v636 = vld [vmem:[#allocation7 + $0xc0] sm:$0xf]
        %v637 = vld [vmem:[#allocation7 + $0xc4] sm:$0xf]
        %v638 = vld [vmem:[#allocation7 + $0xc8] sm:$0xf]
        %v639 = vld [vmem:[#allocation7 + $0xcc] sm:$0xf]
        %v640 = vld [vmem:[#allocation7 + $0xd0] sm:$0xf]
        %v641 = vld [vmem:[#allocation7 + $0xd4] sm:$0xf]
        %v642 = vld [vmem:[#allocation7 + $0xd8] sm:$0xf]
        %v643 = vld [vmem:[#allocation7 + $0xdc] sm:$0xf]
        %v644 = vld [vmem:[#allocation7 + $0xe0] sm:$0xf]
        %v645 = vld [vmem:[#allocation7 + $0xe4] sm:$0xf]
        %v646 = vld [vmem:[#allocation7 + $0xe8] sm:$0xf]
        %v647 = vld [vmem:[#allocation7 + $0xec] sm:$0xf]
        %v648 = vld [vmem:[#allocation7 + $0xf0] sm:$0xf]
        %v649 = vld [vmem:[#allocation7 + $0xf4] sm:$0xf]
        %v650 = vld [vmem:[#allocation7 + $0xf8] sm:$0xf]
        %v651 = vld [vmem:[#allocation7 + $0xfc] sm:$0xf]
        %v652 = vld [vmem:[#allocation7 + $0x100] sm:$0xf]
        %v653 = vld [vmem:[#allocation7 + $0x104] sm:$0xf]
        %v654 = vld [vmem:[#allocation7 + $0x108] sm:$0xf]
        %v655 = vld [vmem:[#allocation7 + $0x10c] sm:$0xf]
        %v656 = vld [vmem:[#allocation7 + $0x110] sm:$0xf]
        %v657 = vld [vmem:[#allocation7 + $0x114] sm:$0xf]
        %v658 = vld [vmem:[#allocation7 + $0x118] sm:$0xf]
        %v659 = vld [vmem:[#allocation7 + $0x11c] sm:$0xf]
        %v660 = vld [vmem:[#allocation7 + $0x120] sm:$0xf]
        %v661 = vld [vmem:[#allocation7 + $0x124] sm:$0xf]
        %v662 = vld [vmem:[#allocation7 + $0x128] sm:$0xf]
        %v663 = vld [vmem:[#allocation7 + $0x12c] sm:$0xf]
        %v664 = vld [vmem:[#allocation7 + $0x130] sm:$0xf]
        %v665 = vld [vmem:[#allocation7 + $0x134] sm:$0xf]
        %v666 = vld [vmem:[#allocation7 + $0x138] sm:$0xf]
        %v667 = vld [vmem:[#allocation7 + $0x13c] sm:$0xf]
        %v668 = vld [vmem:[#allocation7 + $0x140] sm:$0xf]
        %v669 = vld [vmem:[#allocation7 + $0x144] sm:$0xf]
        %v670 = vld [vmem:[#allocation7 + $0x148] sm:$0xf]
        %v671 = vld [vmem:[#allocation7 + $0x14c] sm:$0xf]
        %v672 = vld [vmem:[#allocation7 + $0x150] sm:$0xf]
        %v673 = vld [vmem:[#allocation7 + $0x154] sm:$0xf]
        %v674 = vld [vmem:[#allocation7 + $0x158] sm:$0xf]
        %v675 = vld [vmem:[#allocation7 + $0x15c] sm:$0xf]
        %v676 = vld [vmem:[#allocation7 + $0x160] sm:$0xf]
        %v677 = vld [vmem:[#allocation7 + $0x164] sm:$0xf]
        %v678 = vld [vmem:[#allocation7 + $0x168] sm:$0xf]
        %v679 = vld [vmem:[#allocation7 + $0x16c] sm:$0xf]
        %v680 = vld [vmem:[#allocation7 + $0x170] sm:$0xf]
        %v681 = vld [vmem:[#allocation7 + $0x174] sm:$0xf]
        %v682 = vld [vmem:[#allocation7 + $0x178] sm:$0xf]
        %v683 = vld [vmem:[#allocation7 + $0x17c] sm:$0xf]
        %v684 = vld [vmem:[#allocation7 + $0x180] sm:$0xf]
        %v685 = vld [vmem:[#allocation7 + $0x184] sm:$0xf]
        %v686 = vld [vmem:[#allocation7 + $0x188] sm:$0xf]
        %v687 = vld [vmem:[#allocation7 + $0x18c] sm:$0xf]
        %v688 = vld [vmem:[#allocation7 + $0x190] sm:$0xf]
        %v689 = vld [vmem:[#allocation7 + $0x194] sm:$0xf]
        %v690 = vld [vmem:[#allocation7 + $0x198] sm:$0xf]
        %v691 = vld [vmem:[#allocation7 + $0x19c] sm:$0xf]
        %v692 = vld [vmem:[#allocation7 + $0x1a0] sm:$0xf]
        %v693 = vld [vmem:[#allocation7 + $0x1a4] sm:$0xf]
        %v694 = vld [vmem:[#allocation7 + $0x1a8] sm:$0xf]
        %v695 = vld [vmem:[#allocation7 + $0x1ac] sm:$0xf]
        %v696 = vld [vmem:[#allocation7 + $0x1b0] sm:$0xf]
        %v697 = vld [vmem:[#allocation7 + $0x1b4] sm:$0xf]
        %v698 = vld [vmem:[#allocation7 + $0x1b8] sm:$0xf]
        %v699 = vld [vmem:[#allocation7 + $0x1bc] sm:$0xf]
        %v812 = vunpack.c.l.b16 %v588
        %v813 = vunpack.c.l.b16 %v589
        %v814 = vunpack.c.l.b16 %v590
        %v815 = vunpack.c.l.b16 %v591
        %v816 = vunpack.c.l.b16 %v592
        %v817 = vunpack.c.l.b16 %v593
        %v818 = vunpack.c.l.b16 %v594
        %v819 = vunpack.c.l.b16 %v595
        %v820 = vunpack.c.l.b16 %v596
        %v821 = vunpack.c.l.b16 %v597
        %v822 = vunpack.c.l.b16 %v598
        %v823 = vunpack.c.l.b16 %v599
        %v824 = vunpack.c.l.b16 %v600
        %v825 = vunpack.c.l.b16 %v601
        %v826 = vunpack.c.l.b16 %v602
        %v827 = vunpack.c.l.b16 %v603
        %v828 = vunpack.c.l.b16 %v604
        %v829 = vunpack.c.l.b16 %v605
        %v830 = vunpack.c.l.b16 %v606
        %v831 = vunpack.c.l.b16 %v607
        %v832 = vunpack.c.l.b16 %v608
        %v833 = vunpack.c.l.b16 %v609
        %v834 = vunpack.c.l.b16 %v610
        %v835 = vunpack.c.l.b16 %v611
        %v836 = vunpack.c.l.b16 %v612
        %v837 = vunpack.c.l.b16 %v613
        %v838 = vunpack.c.l.b16 %v614
        %v839 = vunpack.c.l.b16 %v615
        %v840 = vunpack.c.l.b16 %v616
        %v841 = vunpack.c.l.b16 %v617
        %v842 = vunpack.c.l.b16 %v618
        %v843 = vunpack.c.l.b16 %v619
        %v844 = vunpack.c.l.b16 %v620
        %v845 = vunpack.c.l.b16 %v621
        %v846 = vunpack.c.l.b16 %v622
        %v847 = vunpack.c.l.b16 %v623
        %v848 = vunpack.c.l.b16 %v624
        %v849 = vunpack.c.l.b16 %v625
        %v850 = vunpack.c.l.b16 %v626
        %v851 = vunpack.c.l.b16 %v627
        %v852 = vunpack.c.l.b16 %v628
        %v853 = vunpack.c.l.b16 %v629
        %v854 = vunpack.c.l.b16 %v630
        %v855 = vunpack.c.l.b16 %v631
        %v856 = vunpack.c.l.b16 %v632
        %v857 = vunpack.c.l.b16 %v633
        %v858 = vunpack.c.l.b16 %v634
        %v859 = vunpack.c.l.b16 %v635
        %v860 = vunpack.c.l.b16 %v636
        %v861 = vunpack.c.l.b16 %v637
        %v862 = vunpack.c.l.b16 %v638
        %v863 = vunpack.c.l.b16 %v639
        %v864 = vunpack.c.l.b16 %v640
        %v865 = vunpack.c.l.b16 %v641
        %v866 = vunpack.c.l.b16 %v642
        %v867 = vunpack.c.l.b16 %v643
        %v868 = vunpack.c.l.b16 %v644
        %v869 = vunpack.c.l.b16 %v645
        %v870 = vunpack.c.l.b16 %v646
        %v871 = vunpack.c.l.b16 %v647
        %v872 = vunpack.c.l.b16 %v648
        %v873 = vunpack.c.l.b16 %v649
        %v874 = vunpack.c.l.b16 %v650
        %v875 = vunpack.c.l.b16 %v651
        %v876 = vunpack.c.l.b16 %v652
        %v877 = vunpack.c.l.b16 %v653
        %v878 = vunpack.c.l.b16 %v654
        %v879 = vunpack.c.l.b16 %v655
        %v880 = vunpack.c.l.b16 %v656
        %v881 = vunpack.c.l.b16 %v657
        %v882 = vunpack.c.l.b16 %v658
        %v883 = vunpack.c.l.b16 %v659
        %v884 = vunpack.c.l.b16 %v660
        %v885 = vunpack.c.l.b16 %v661
        %v886 = vunpack.c.l.b16 %v662
        %v887 = vunpack.c.l.b16 %v663
        %v888 = vunpack.c.l.b16 %v664
        %v889 = vunpack.c.l.b16 %v665
        %v890 = vunpack.c.l.b16 %v666
        %v891 = vunpack.c.l.b16 %v667
        %v892 = vunpack.c.l.b16 %v668
        %v893 = vunpack.c.l.b16 %v669
        %v894 = vunpack.c.l.b16 %v670
        %v895 = vunpack.c.l.b16 %v671
        %v896 = vunpack.c.l.b16 %v672
        %v897 = vunpack.c.l.b16 %v673
        %v898 = vunpack.c.l.b16 %v674
        %v899 = vunpack.c.l.b16 %v675
        %v900 = vunpack.c.l.b16 %v676
        %v901 = vunpack.c.l.b16 %v677
        %v902 = vunpack.c.l.b16 %v678
        %v903 = vunpack.c.l.b16 %v679
        %v904 = vunpack.c.l.b16 %v680
        %v905 = vunpack.c.l.b16 %v681
        %v906 = vunpack.c.l.b16 %v682
        %v907 = vunpack.c.l.b16 %v683
        %v908 = vunpack.c.l.b16 %v684
        %v909 = vunpack.c.l.b16 %v685
        %v910 = vunpack.c.l.b16 %v686
        %v911 = vunpack.c.l.b16 %v687
        %v912 = vunpack.c.l.b16 %v688
        %v913 = vunpack.c.l.b16 %v689
        %v914 = vunpack.c.l.b16 %v690
        %v915 = vunpack.c.l.b16 %v691
        %v916 = vunpack.c.l.b16 %v692
        %v917 = vunpack.c.l.b16 %v693
        %v918 = vunpack.c.l.b16 %v694
        %v919 = vunpack.c.l.b16 %v695
        %v920 = vunpack.c.l.b16 %v696
        %v921 = vunpack.c.l.b16 %v697
        %v922 = vunpack.c.l.b16 %v698
        %v923 = vunpack.c.l.b16 %v699
        %v924 = vpack.c.b16 %v813, %v812
        %v925 = vpack.c.b16 %v815, %v814
        %v926 = vpack.c.b16 %v817, %v816
        %v927 = vpack.c.b16 %v819, %v818
        %v928 = vpack.c.b16 %v821, %v820
        %v929 = vpack.c.b16 %v823, %v822
        %v930 = vpack.c.b16 %v825, %v824
        %v931 = vpack.c.b16 %v827, %v826
        %v932 = vpack.c.b16 %v829, %v828
        %v933 = vpack.c.b16 %v831, %v830
        %v934 = vpack.c.b16 %v833, %v832
        %v935 = vpack.c.b16 %v835, %v834
        %v936 = vpack.c.b16 %v837, %v836
        %v937 = vpack.c.b16 %v839, %v838
        %v938 = vpack.c.b16 %v841, %v840
        %v939 = vpack.c.b16 %v843, %v842
        %v940 = vpack.c.b16 %v845, %v844
        %v941 = vpack.c.b16 %v847, %v846
        %v942 = vpack.c.b16 %v849, %v848
        %v943 = vpack.c.b16 %v851, %v850
        %v944 = vpack.c.b16 %v853, %v852
        %v945 = vpack.c.b16 %v855, %v854
        %v946 = vpack.c.b16 %v857, %v856
        %v947 = vpack.c.b16 %v859, %v858
        %v948 = vpack.c.b16 %v861, %v860
        %v949 = vpack.c.b16 %v863, %v862
        %v950 = vpack.c.b16 %v865, %v864
        %v951 = vpack.c.b16 %v867, %v866
        %v952 = vpack.c.b16 %v869, %v868
        %v953 = vpack.c.b16 %v871, %v870
        %v954 = vpack.c.b16 %v873, %v872
        %v955 = vpack.c.b16 %v875, %v874
        %v956 = vpack.c.b16 %v877, %v876
        %v957 = vpack.c.b16 %v879, %v878
        %v958 = vpack.c.b16 %v881, %v880
        %v959 = vpack.c.b16 %v883, %v882
        %v960 = vpack.c.b16 %v885, %v884
        %v961 = vpack.c.b16 %v887, %v886
        %v962 = vpack.c.b16 %v889, %v888
        %v963 = vpack.c.b16 %v891, %v890
        %v964 = vpack.c.b16 %v893, %v892
        %v965 = vpack.c.b16 %v895, %v894
        %v966 = vpack.c.b16 %v897, %v896
        %v967 = vpack.c.b16 %v899, %v898
        %v968 = vpack.c.b16 %v901, %v900
        %v969 = vpack.c.b16 %v903, %v902
        %v970 = vpack.c.b16 %v905, %v904
        %v971 = vpack.c.b16 %v907, %v906
        %v972 = vpack.c.b16 %v909, %v908
        %v973 = vpack.c.b16 %v911, %v910
        %v974 = vpack.c.b16 %v913, %v912
        %v975 = vpack.c.b16 %v915, %v914
        %v976 = vpack.c.b16 %v917, %v916
        %v977 = vpack.c.b16 %v919, %v918
        %v978 = vpack.c.b16 %v921, %v920
        %v979 = vpack.c.b16 %v923, %v922
        %1036 = vmatprep.subr.bf16.mxu0 0
        %1037 = vmatpush1.bf16.msra.mxu0 %v924
        %1038 = vmatprep.subr.bf16.mxu0 0
        %1039 = vmatpush1.bf16.msra.mxu0 %v925
        %1040 = vmatprep.subr.bf16.mxu0 0
        %1041 = vmatpush1.bf16.msra.mxu0 %v926
        %1042 = vmatprep.subr.bf16.mxu0 0
        %1043 = vmatpush1.bf16.msra.mxu0 %v927
        %1044 = vmatprep.subr.bf16.mxu0 0
        %1045 = vmatpush1.bf16.msra.mxu0 %v928
        %1046 = vmatprep.subr.bf16.mxu0 0
        %1047 = vmatpush1.bf16.msra.mxu0 %v929
        %1048 = vmatprep.subr.bf16.mxu0 0
        %1049 = vmatpush1.bf16.msra.mxu0 %v930
        %1050 = vmatprep.subr.bf16.mxu0 0
        %1051 = vmatpush1.bf16.msra.mxu0 %v931
        %1052 = vmatprep.subr.bf16.mxu0 0
        %1053 = vmatpush1.bf16.msra.mxu0 %v932
        %1054 = vmatprep.subr.bf16.mxu0 0
        %1055 = vmatpush1.bf16.msra.mxu0 %v933
        %1056 = vmatprep.subr.bf16.mxu0 0
        %1057 = vmatpush1.bf16.msra.mxu0 %v934
        %1058 = vmatprep.subr.bf16.mxu0 0
        %1059 = vmatpush1.bf16.msra.mxu0 %v935
        %1060 = vmatprep.subr.bf16.mxu0 0
        %1061 = vmatpush1.bf16.msra.mxu0 %v936
        %1062 = vmatprep.subr.bf16.mxu0 0
        %1063 = vmatpush1.bf16.msra.mxu0 %v937
        %1064 = vmatprep.subr.bf16.mxu0 0
        %1065 = vmatpush1.bf16.msra.mxu0 %v938
        %1066 = vmatprep.subr.bf16.mxu0 0
        %1067 = vmatpush1.bf16.msra.mxu0 %v939
        %1068 = vmatprep.mubr.bf16.mxu0 %v575
        %1069 = vmatmul.mubr.bf16.gmra.mrb[0].mxu0 %v574
        %v1070 = vpop.f32.mrb[0].mxu0
        %v1071 = vadd.f32 0.0, %v1070
        %v1072 = vpop.f32.mrb[0].mxu0
        %v1073 = vpop.f32.mrb[0].mxu0
        %v1074 = vadd.f32 0.0, %v1073
        %v1075 = vpop.f32.mrb[0].mxu0
        %1076 = vmatprep.mubr.bf16.mxu0 %v582
        %1077 = vmatmul.mubr.bf16.gmra.mrb[0].mxu0 %v581
        %v1078 = vpop.f32.mrb[0].mxu0
        %v1079 = vadd.f32 0.0, %v1078
        %v1080 = vpop.f32.mrb[0].mxu0
        %v1081 = vpop.f32.mrb[0].mxu0
        %v1082 = vadd.f32 0.0, %v1081
        %v1083 = vpop.f32.mrb[0].mxu0
        %1084 = vdwg.mxu0
        %1085 = vmatprep.subr.bf16.mxu0 0
        %1086 = vmatpush1.bf16.msra.mxu0 %v940
        %1087 = vmatprep.subr.bf16.mxu0 0
        %1088 = vmatpush1.bf16.msra.mxu0 %v941
        %1089 = vmatprep.subr.bf16.mxu0 0
        %1090 = vmatpush1.bf16.msra.mxu0 %v942
        %1091 = vmatprep.subr.bf16.mxu0 0
        %1092 = vmatpush1.bf16.msra.mxu0 %v943
        %1093 = vmatprep.subr.bf16.mxu0 0
        %1094 = vmatpush1.bf16.msra.mxu0 %v944
        %1095 = vmatprep.subr.bf16.mxu0 0
        %1096 = vmatpush1.bf16.msra.mxu0 %v945
        %1097 = vmatprep.subr.bf16.mxu0 0
        %1098 = vmatpush1.bf16.msra.mxu0 %v946
        %1099 = vmatprep.subr.bf16.mxu0 0
        %1100 = vmatpush1.bf16.msra.mxu0 %v947
        %1101 = vmatprep.subr.bf16.mxu0 0
        %1102 = vmatpush1.bf16.msra.mxu0 %v948
        %1103 = vmatprep.subr.bf16.mxu0 0
        %1104 = vmatpush1.bf16.msra.mxu0 %v949
        %1105 = vmatprep.subr.bf16.mxu0 0
        %1106 = vmatpush1.bf16.msra.mxu0 %v950
        %1107 = vmatprep.subr.bf16.mxu0 0
        %1108 = vmatpush1.bf16.msra.mxu0 %v951
        %1109 = vmatprep.subr.bf16.mxu0 0
        %1110 = vmatpush1.bf16.msra.mxu0 %v952
        %1111 = vmatprep.subr.bf16.mxu0 0
        %1112 = vmatpush1.bf16.msra.mxu0 %v953
        %1113 = vmatprep.subr.bf16.mxu0 0
        %1114 = vmatpush1.bf16.msra.mxu0 %v954
        %1115 = vmatprep.subr.bf16.mxu0 0
        %1116 = vmatpush1.bf16.msra.mxu0 %v955
        %1117 = vmatprep.mubr.bf16.mxu0 %v577
        %1118 = vmatmul.mubr.bf16.gmra.mrb[0].mxu0 %v576
        %v1119 = vpop.f32.mrb[0].mxu0
        %v1120 = vadd.f32 %v1071, %v1119
        %v1121 = vpop.f32.mrb[0].mxu0
        %v1122 = vpop.f32.mrb[0].mxu0
        %v1123 = vadd.f32 %v1074, %v1122
        %v1124 = vpop.f32.mrb[0].mxu0
        %1125 = vmatprep.mubr.bf16.mxu0 %v584
        %1126 = vmatmul.mubr.bf16.gmra.mrb[0].mxu0 %v583
        %v1127 = vpop.f32.mrb[0].mxu0
        %v1128 = vadd.f32 %v1079, %v1127
        %v1129 = vpop.f32.mrb[0].mxu0
        %v1130 = vpop.f32.mrb[0].mxu0
        %v1131 = vadd.f32 %v1082, %v1130
        %v1132 = vpop.f32.mrb[0].mxu0
        %1133 = vdwg.mxu0
        %1134 = vmatprep.subr.bf16.mxu0 0
        %1135 = vmatpush1.bf16.msra.mxu0 %v956
        %1136 = vmatprep.subr.bf16.mxu0 0
        %1137 = vmatpush1.bf16.msra.mxu0 %v957
        %1138 = vmatprep.subr.bf16.mxu0 0
        %1139 = vmatpush1.bf16.msra.mxu0 %v958
        %1140 = vmatprep.subr.bf16.mxu0 0
        %1141 = vmatpush1.bf16.msra.mxu0 %v959
        %1142 = vmatprep.subr.bf16.mxu0 0
        %1143 = vmatpush1.bf16.msra.mxu0 %v960
        %1144 = vmatprep.subr.bf16.mxu0 0
        %1145 = vmatpush1.bf16.msra.mxu0 %v961
        %1146 = vmatprep.subr.bf16.mxu0 0
        %1147 = vmatpush1.bf16.msra.mxu0 %v962
        %1148 = vmatprep.subr.bf16.mxu0 0
        %1149 = vmatpush1.bf16.msra.mxu0 %v963
        %1150 = vmatprep.subr.bf16.mxu0 0
        %1151 = vmatpush1.bf16.msra.mxu0 %v964
        %1152 = vmatprep.subr.bf16.mxu0 0
        %1153 = vmatpush1.bf16.msra.mxu0 %v965
        %1154 = vmatprep.subr.bf16.mxu0 0
        %1155 = vmatpush1.bf16.msra.mxu0 %v966
        %1156 = vmatprep.subr.bf16.mxu0 0
        %1157 = vmatpush1.bf16.msra.mxu0 %v967
        %1158 = vmatprep.subr.bf16.mxu0 0
        %1159 = vmatpush1.bf16.msra.mxu0 %v968
        %1160 = vmatprep.subr.bf16.mxu0 0
        %1161 = vmatpush1.bf16.msra.mxu0 %v969
        %1162 = vmatprep.subr.bf16.mxu0 0
        %1163 = vmatpush1.bf16.msra.mxu0 %v970
        %1164 = vmatprep.subr.bf16.mxu0 0
        %1165 = vmatpush1.bf16.msra.mxu0 %v971
        %1166 = vmatprep.mubr.bf16.mxu0 %v579
        %1167 = vmatmul.mubr.bf16.gmra.mrb[0].mxu0 %v578
        %v1168 = vpop.f32.mrb[0].mxu0
        %v1169 = vadd.f32 %v1120, %v1168
        %v1170 = vpop.f32.mrb[0].mxu0
        %v1171 = vpop.f32.mrb[0].mxu0
        %v1172 = vadd.f32 %v1123, %v1171
        %v1173 = vpop.f32.mrb[0].mxu0
        %1174 = vmatprep.mubr.bf16.mxu0 %v586
        %1175 = vmatmul.mubr.bf16.gmra.mrb[0].mxu0 %v585
        %v1176 = vpop.f32.mrb[0].mxu0
        %v1177 = vadd.f32 %v1128, %v1176
        %v1178 = vpop.f32.mrb[0].mxu0
        %v1179 = vpop.f32.mrb[0].mxu0
        %v1180 = vadd.f32 %v1131, %v1179
        %v1181 = vpop.f32.mrb[0].mxu0
        %1182 = vdwg.mxu0
        %1183 = vmatprep.subr.bf16.mxu0 0
        %1184 = vmatpush1.bf16.msra.mxu0 %v972
        %1185 = vmatprep.subr.bf16.mxu0 0
        %1186 = vmatpush1.bf16.msra.mxu0 %v973
        %1187 = vmatprep.subr.bf16.mxu0 0
        %1188 = vmatpush1.bf16.msra.mxu0 %v974
        %1189 = vmatprep.subr.bf16.mxu0 0
        %1190 = vmatpush1.bf16.msra.mxu0 %v975
        %1191 = vmatprep.subr.bf16.mxu0 0
        %1192 = vmatpush1.bf16.msra.mxu0 %v976
        %1193 = vmatprep.subr.bf16.mxu0 0
        %1194 = vmatpush1.bf16.msra.mxu0 %v977
        %1195 = vmatprep.subr.bf16.mxu0 0
        %1196 = vmatpush1.bf16.msra.mxu0 %v978
        %1197 = vmatprep.subr.bf16.mxu0 0
        %1198 = vmatpush1.bf16.msra.mxu0 %v979
        %1199 = vmatprep.subr.bf16.mxu0 0
        %1200 = vmatpush1.bf16.msra.mxu0 0
        %1201 = vmatprep.subr.bf16.mxu0 0
        %1202 = vmatpush1.bf16.msra.mxu0 0
        %1203 = vmatprep.subr.bf16.mxu0 0
        %1204 = vmatpush1.bf16.msra.mxu0 0
        %1205 = vmatprep.subr.bf16.mxu0 0
        %1206 = vmatpush1.bf16.msra.mxu0 0
        %1207 = vmatprep.subr.bf16.mxu0 0
        %1208 = vmatpush1.bf16.msra.mxu0 0
        %1209 = vmatprep.subr.bf16.mxu0 0
        %1210 = vmatpush1.bf16.msra.mxu0 0
        %1211 = vmatprep.subr.bf16.mxu0 0
        %1212 = vmatpush1.bf16.msra.mxu0 0
        %1213 = vmatprep.subr.bf16.mxu0 0
        %1214 = vmatpush1.bf16.msra.mxu0 0
        %1215 = vmatprep.mubr.bf16.mxu0 0
        %1216 = vmatmul.mubr.bf16.gmra.mrb[0].mxu0 %v580
        %v1217 = vpop.f32.mrb[0].mxu0
        %v1218 = vadd.f32 %v1169, %v1217
        %v1219 = vpop.f32.mrb[0].mxu0
        %v1220 = vpop.f32.mrb[0].mxu0
        %v1221 = vadd.f32 %v1172, %v1220
        %v1222 = vpop.f32.mrb[0].mxu0
        %1223 = vmatprep.mubr.bf16.mxu0 0
        %1224 = vmatmul.mubr.bf16.gmra.mrb[0].mxu0 %v587
        %v1225 = vpop.f32.mrb[0].mxu0
        %v1226 = vadd.f32 %v1177, %v1225
        %v1227 = vpop.f32.mrb[0].mxu0
        %v1228 = vpop.f32.mrb[0].mxu0
        %v1229 = vadd.f32 %v1180, %v1228
        %v1230 = vpop.f32.mrb[0].mxu0
        %1231 = vdwg.mxu0
        %v1233 = vlaneseq
        %v1234 = vshrl.u32 %v1233, 7
        %v1235 = vsub.s32 0, %v1234
        %v1236 = vrot.slane %v426, %v1235
        %v1238 = vmul.f32 %v1218, %v1236
        %v1239 = vmul.f32 %v1221, %v1236
        %v1240 = vmul.f32 %v1226, %v1236
        %v1241 = vmul.f32 %v1229, %v1236
        %v1243 = vlaneseq
        %v1244 = vshrl.u32 %v1243, 7
        %v1245 = vsub.s32 0, %v1244
        %v1246 = vrot.slane %v427, %v1245
        %v1248 = vadd.f32 %v1238, %v1246
        %v1249 = vadd.f32 %v1239, %v1246
        %v1250 = vadd.f32 %v1240, %v1246
        %v1251 = vadd.f32 %v1241, %v1246
        %v1252 = vmax.f32 %v1248, 0.0
        %v1253 = vmax.f32 %v1249, 0.0
        %v1254 = vmax.f32 %v1250, 0.0
        %v1255 = vmax.f32 %v1251, 0.0
        %v1256 = vpack.c.bf16 %v1253, %v1252
        %v1257 = vpack.c.bf16 %v1255, %v1254
        %v1258 = vld [vmem:[#allocation3] sm:$0x3]
        %v1259 = vsel %vm434, 0, %v1258
        %1260 = vst [vmem:[#allocation3] sm:$0x3] %v1259
        %v1262 = vshrl.u32 %v1256, 16
        %v1264 = vrot.slane %v1262, 6
        %v1265 = vshll.u32 %v1256, 16
        %v1267 = vrot.slane %v1265, 7
        %v1268 = vor.u32 %v1264, %v1267
        %v1270 = vld [vmem:[#allocation3] sm:$0xfe]
        %v1271 = vsel %vm454, %v1268, %v1270
        %1272 = vst [vmem:[#allocation3] sm:$0xfe] %v1271
        %1273 = vst [vmem:[#allocation3 + $0x8] sm:$0x1] 0
        %v1275 = vrot.slane %v1256, 7
        %1277 = vst [vmem:[#allocation3 + $0x8] sm:$0xfe] %v1275
        %v1278 = vld [vmem:[#allocation3 + $0x10] sm:$0x1]
        %v1279 = vsel %vm464, 0, %v1278
        %1280 = vst [vmem:[#allocation3 + $0x10] sm:$0x1] %v1279
        %v1281 = vrot.slane %v1262, 7
        %v1282 = vor.u32 %v1281, %v1265
        %v1284 = vld [vmem:[#allocation3 + $0x10] sm:$0xff]
        %v1285 = vsel %vm473, %v1282, %v1284
        %1286 = vst [vmem:[#allocation3 + $0x10] sm:$0xff] %v1285
        %1287 = vst [vmem:[#allocation3 + $0x18] sm:$0xff] %v1256
        %v1288 = vld [vmem:[#allocation3 + $0x20] sm:$0x80]
        %v1289 = vsel %vm481, 0, %v1288
        %1290 = vst [vmem:[#allocation3 + $0x20] sm:$0x80] %v1289
        %v1291 = vrot.slane %v1265, 1
        %v1292 = vor.u32 %v1262, %v1291
        %v1294 = vld [vmem:[#allocation3 + $0x20] sm:$0xff]
        %v1295 = vsel %vm489, %v1292, %v1294
        %1296 = vst [vmem:[#allocation3 + $0x20] sm:$0xff] %v1295
        %1297 = vst [vmem:[#allocation3 + $0x28] sm:$0x80] 0
        %v1298 = vrot.slane %v1256, 1
        %1300 = vst [vmem:[#allocation3 + $0x28] sm:$0x7f] %v1298
        %v1301 = vld [vmem:[#allocation3 + $0x30] sm:$0xc0]
        %v1302 = vsel %vm499, 0, %v1301
        %1303 = vst [vmem:[#allocation3 + $0x30] sm:$0xc0] %v1302
        %v1304 = vrot.slane %v1262, 1
        %v1305 = vrot.slane %v1265, 2
        %v1306 = vor.u32 %v1304, %v1305
        %v1308 = vld [vmem:[#allocation3 + $0x30] sm:$0x7f]
        %v1309 = vsel %vm509, %v1306, %v1308
        %1310 = vst [vmem:[#allocation3 + $0x30] sm:$0x7f] %v1309
        %v1311 = vld [vmem:[#allocation3 + $0x38] sm:$0x3]
        %v1312 = vsel %vm434, 0, %v1311
        %1313 = vst [vmem:[#allocation3 + $0x38] sm:$0x3] %v1312
        %v1315 = vshrl.u32 %v1257, 16
        %v1317 = vrot.slane %v1315, 6
        %v1318 = vshll.u32 %v1257, 16
        %v1320 = vrot.slane %v1318, 7
        %v1321 = vor.u32 %v1317, %v1320
        %v1323 = vld [vmem:[#allocation3 + $0x38] sm:$0xfe]
        %v1324 = vsel %vm454, %v1321, %v1323
        %1325 = vst [vmem:[#allocation3 + $0x38] sm:$0xfe] %v1324
        %1326 = vst [vmem:[#allocation3 + $0x40] sm:$0x1] 0
        %v1328 = vrot.slane %v1257, 7
        %1330 = vst [vmem:[#allocation3 + $0x40] sm:$0xfe] %v1328
        %v1331 = vld [vmem:[#allocation3 + $0x48] sm:$0x1]
        %v1332 = vsel %vm464, 0, %v1331
        %1333 = vst [vmem:[#allocation3 + $0x48] sm:$0x1] %v1332
        %v1334 = vrot.slane %v1315, 7
        %v1335 = vor.u32 %v1334, %v1318
        %v1337 = vld [vmem:[#allocation3 + $0x48] sm:$0xff]
        %v1338 = vsel %vm473, %v1335, %v1337
        %1339 = vst [vmem:[#allocation3 + $0x48] sm:$0xff] %v1338
        %1340 = vst [vmem:[#allocation3 + $0x50] sm:$0xff] %v1257
        %v1341 = vld [vmem:[#allocation3 + $0x58] sm:$0x80]
        %v1342 = vsel %vm481, 0, %v1341
        %1343 = vst [vmem:[#allocation3 + $0x58] sm:$0x80] %v1342
        %v1344 = vrot.slane %v1318, 1
        %v1345 = vor.u32 %v1315, %v1344
        %v1347 = vld [vmem:[#allocation3 + $0x58] sm:$0xff]
        %v1348 = vsel %vm489, %v1345, %v1347
        %1349 = vst [vmem:[#allocation3 + $0x58] sm:$0xff] %v1348
        %1350 = vst [vmem:[#allocation3 + $0x60] sm:$0x80] 0
        %v1351 = vrot.slane %v1257, 1
        %1353 = vst [vmem:[#allocation3 + $0x60] sm:$0x7f] %v1351
        %v1354 = vld [vmem:[#allocation3 + $0x68] sm:$0xc0]
        %v1355 = vsel %vm499, 0, %v1354
        %1356 = vst [vmem:[#allocation3 + $0x68] sm:$0xc0] %v1355
        %v1357 = vrot.slane %v1315, 1
        %v1358 = vrot.slane %v1318, 2
        %v1359 = vor.u32 %v1357, %v1358
        %v1361 = vld [vmem:[#allocation3 + $0x68] sm:$0x7f]
        %v1362 = vsel %vm509, %v1359, %v1361
        %1363 = vst [vmem:[#allocation3 + $0x68] sm:$0x7f] %v1362
        %v1364 = vld [vmem:[#allocation3] sm:$0xff]
        %v1365 = vld [vmem:[#allocation3 + $0x8] sm:$0xff]
        %v1366 = vld [vmem:[#allocation3 + $0x10] sm:$0xff]
        %v1367 = vld [vmem:[#allocation3 + $0x18] sm:$0xff]
        %v1368 = vld [vmem:[#allocation3 + $0x20] sm:$0xff]
        %v1369 = vld [vmem:[#allocation3 + $0x28] sm:$0xff]
        %v1370 = vld [vmem:[#allocation3 + $0x30] sm:$0xff]
        %v1371 = vld [vmem:[#allocation3 + $0x38] sm:$0xff]
        %v1372 = vld [vmem:[#allocation3 + $0x40] sm:$0xff]
        %v1373 = vld [vmem:[#allocation3 + $0x48] sm:$0xff]
        %v1374 = vld [vmem:[#allocation3 + $0x50] sm:$0xff]
        %v1375 = vld [vmem:[#allocation3 + $0x58] sm:$0xff]
        %v1376 = vld [vmem:[#allocation3 + $0x60] sm:$0xff]
        %v1377 = vld [vmem:[#allocation3 + $0x68] sm:$0xff]
        %v1378 = vld [vmem:[#allocation9] sm:$0xf]
        %v1379 = vld [vmem:[#allocation9 + $0x4] sm:$0xf]
        %v1380 = vld [vmem:[#allocation9 + $0x8] sm:$0xf]
        %v1381 = vld [vmem:[#allocation9 + $0xc] sm:$0xf]
        %v1382 = vld [vmem:[#allocation9 + $0x10] sm:$0xf]
        %v1383 = vld [vmem:[#allocation9 + $0x14] sm:$0xf]
        %v1384 = vld [vmem:[#allocation9 + $0x18] sm:$0xf]
        %v1385 = vld [vmem:[#allocation9 + $0x1c] sm:$0xf]
        %v1386 = vld [vmem:[#allocation9 + $0x20] sm:$0xf]
        %v1387 = vld [vmem:[#allocation9 + $0x24] sm:$0xf]
        %v1388 = vld [vmem:[#allocation9 + $0x28] sm:$0xf]
        %v1389 = vld [vmem:[#allocation9 + $0x2c] sm:$0xf]
        %v1390 = vld [vmem:[#allocation9 + $0x30] sm:$0xf]
        %v1391 = vld [vmem:[#allocation9 + $0x34] sm:$0xf]
        %v1392 = vld [vmem:[#allocation9 + $0x38] sm:$0xf]
        %v1393 = vld [vmem:[#allocation9 + $0x3c] sm:$0xf]
        %v1394 = vld [vmem:[#allocation9 + $0x40] sm:$0xf]
        %v1395 = vld [vmem:[#allocation9 + $0x44] sm:$0xf]
        %v1396 = vld [vmem:[#allocation9 + $0x48] sm:$0xf]
        %v1397 = vld [vmem:[#allocation9 + $0x4c] sm:$0xf]
        %v1398 = vld [vmem:[#allocation9 + $0x50] sm:$0xf]
        %v1399 = vld [vmem:[#allocation9 + $0x54] sm:$0xf]
        %v1400 = vld [vmem:[#allocation9 + $0x58] sm:$0xf]
        %v1401 = vld [vmem:[#allocation9 + $0x5c] sm:$0xf]
        %v1402 = vld [vmem:[#allocation9 + $0x60] sm:$0xf]
        %v1403 = vld [vmem:[#allocation9 + $0x64] sm:$0xf]
        %v1404 = vld [vmem:[#allocation9 + $0x68] sm:$0xf]
        %v1405 = vld [vmem:[#allocation9 + $0x6c] sm:$0xf]
        %v1406 = vld [vmem:[#allocation9 + $0x70] sm:$0xf]
        %v1407 = vld [vmem:[#allocation9 + $0x74] sm:$0xf]
        %v1408 = vld [vmem:[#allocation9 + $0x78] sm:$0xf]
        %v1409 = vld [vmem:[#allocation9 + $0x7c] sm:$0xf]
        %v1410 = vld [vmem:[#allocation9 + $0x80] sm:$0xf]
        %v1411 = vld [vmem:[#allocation9 + $0x84] sm:$0xf]
        %v1412 = vld [vmem:[#allocation9 + $0x88] sm:$0xf]
        %v1413 = vld [vmem:[#allocation9 + $0x8c] sm:$0xf]
        %v1414 = vld [vmem:[#allocation9 + $0x90] sm:$0xf]
        %v1415 = vld [vmem:[#allocation9 + $0x94] sm:$0xf]
        %v1416 = vld [vmem:[#allocation9 + $0x98] sm:$0xf]
        %v1417 = vld [vmem:[#allocation9 + $0x9c] sm:$0xf]
        %v1418 = vld [vmem:[#allocation9 + $0xa0] sm:$0xf]
        %v1419 = vld [vmem:[#allocation9 + $0xa4] sm:$0xf]
        %v1420 = vld [vmem:[#allocation9 + $0xa8] sm:$0xf]
        %v1421 = vld [vmem:[#allocation9 + $0xac] sm:$0xf]
        %v1422 = vld [vmem:[#allocation9 + $0xb0] sm:$0xf]
        %v1423 = vld [vmem:[#allocation9 + $0xb4] sm:$0xf]
        %v1424 = vld [vmem:[#allocation9 + $0xb8] sm:$0xf]
        %v1425 = vld [vmem:[#allocation9 + $0xbc] sm:$0xf]
        %v1426 = vld [vmem:[#allocation9 + $0xc0] sm:$0xf]
        %v1427 = vld [vmem:[#allocation9 + $0xc4] sm:$0xf]
        %v1428 = vld [vmem:[#allocation9 + $0xc8] sm:$0xf]
        %v1429 = vld [vmem:[#allocation9 + $0xcc] sm:$0xf]
        %v1430 = vld [vmem:[#allocation9 + $0xd0] sm:$0xf]
        %v1431 = vld [vmem:[#allocation9 + $0xd4] sm:$0xf]
        %v1432 = vld [vmem:[#allocation9 + $0xd8] sm:$0xf]
        %v1433 = vld [vmem:[#allocation9 + $0xdc] sm:$0xf]
        %v1434 = vld [vmem:[#allocation9 + $0xe0] sm:$0xf]
        %v1435 = vld [vmem:[#allocation9 + $0xe4] sm:$0xf]
        %v1436 = vld [vmem:[#allocation9 + $0xe8] sm:$0xf]
        %v1437 = vld [vmem:[#allocation9 + $0xec] sm:$0xf]
        %v1438 = vld [vmem:[#allocation9 + $0xf0] sm:$0xf]
        %v1439 = vld [vmem:[#allocation9 + $0xf4] sm:$0xf]
        %v1440 = vld [vmem:[#allocation9 + $0xf8] sm:$0xf]
        %v1441 = vld [vmem:[#allocation9 + $0xfc] sm:$0xf]
        %v1442 = vld [vmem:[#allocation9 + $0x100] sm:$0xf]
        %v1443 = vld [vmem:[#allocation9 + $0x104] sm:$0xf]
        %v1444 = vld [vmem:[#allocation9 + $0x108] sm:$0xf]
        %v1445 = vld [vmem:[#allocation9 + $0x10c] sm:$0xf]
        %v1446 = vld [vmem:[#allocation9 + $0x110] sm:$0xf]
        %v1447 = vld [vmem:[#allocation9 + $0x114] sm:$0xf]
        %v1448 = vld [vmem:[#allocation9 + $0x118] sm:$0xf]
        %v1449 = vld [vmem:[#allocation9 + $0x11c] sm:$0xf]
        %v1450 = vld [vmem:[#allocation9 + $0x120] sm:$0xf]
        %v1451 = vld [vmem:[#allocation9 + $0x124] sm:$0xf]
        %v1452 = vld [vmem:[#allocation9 + $0x128] sm:$0xf]
        %v1453 = vld [vmem:[#allocation9 + $0x12c] sm:$0xf]
        %v1454 = vld [vmem:[#allocation9 + $0x130] sm:$0xf]
        %v1455 = vld [vmem:[#allocation9 + $0x134] sm:$0xf]
        %v1456 = vld [vmem:[#allocation9 + $0x138] sm:$0xf]
        %v1457 = vld [vmem:[#allocation9 + $0x13c] sm:$0xf]
        %v1458 = vld [vmem:[#allocation9 + $0x140] sm:$0xf]
        %v1459 = vld [vmem:[#allocation9 + $0x144] sm:$0xf]
        %v1460 = vld [vmem:[#allocation9 + $0x148] sm:$0xf]
        %v1461 = vld [vmem:[#allocation9 + $0x14c] sm:$0xf]
        %v1462 = vld [vmem:[#allocation9 + $0x150] sm:$0xf]
        %v1463 = vld [vmem:[#allocation9 + $0x154] sm:$0xf]
        %v1464 = vld [vmem:[#allocation9 + $0x158] sm:$0xf]
        %v1465 = vld [vmem:[#allocation9 + $0x15c] sm:$0xf]
        %v1466 = vld [vmem:[#allocation9 + $0x160] sm:$0xf]
        %v1467 = vld [vmem:[#allocation9 + $0x164] sm:$0xf]
        %v1468 = vld [vmem:[#allocation9 + $0x168] sm:$0xf]
        %v1469 = vld [vmem:[#allocation9 + $0x16c] sm:$0xf]
        %v1470 = vld [vmem:[#allocation9 + $0x170] sm:$0xf]
        %v1471 = vld [vmem:[#allocation9 + $0x174] sm:$0xf]
        %v1472 = vld [vmem:[#allocation9 + $0x178] sm:$0xf]
        %v1473 = vld [vmem:[#allocation9 + $0x17c] sm:$0xf]
        %v1474 = vld [vmem:[#allocation9 + $0x180] sm:$0xf]
        %v1475 = vld [vmem:[#allocation9 + $0x184] sm:$0xf]
        %v1476 = vld [vmem:[#allocation9 + $0x188] sm:$0xf]
        %v1477 = vld [vmem:[#allocation9 + $0x18c] sm:$0xf]
        %v1478 = vld [vmem:[#allocation9 + $0x190] sm:$0xf]
        %v1479 = vld [vmem:[#allocation9 + $0x194] sm:$0xf]
        %v1480 = vld [vmem:[#allocation9 + $0x198] sm:$0xf]
        %v1481 = vld [vmem:[#allocation9 + $0x19c] sm:$0xf]
        %v1482 = vld [vmem:[#allocation9 + $0x1a0] sm:$0xf]
        %v1483 = vld [vmem:[#allocation9 + $0x1a4] sm:$0xf]
        %v1484 = vld [vmem:[#allocation9 + $0x1a8] sm:$0xf]
        %v1485 = vld [vmem:[#allocation9 + $0x1ac] sm:$0xf]
        %v1486 = vld [vmem:[#allocation9 + $0x1b0] sm:$0xf]
        %v1487 = vld [vmem:[#allocation9 + $0x1b4] sm:$0xf]
        %v1488 = vld [vmem:[#allocation9 + $0x1b8] sm:$0xf]
        %v1489 = vld [vmem:[#allocation9 + $0x1bc] sm:$0xf]
        %v1602 = vunpack.c.l.b16 %v1378
        %v1603 = vunpack.c.l.b16 %v1379
        %v1604 = vunpack.c.l.b16 %v1380
        %v1605 = vunpack.c.l.b16 %v1381
        %v1606 = vunpack.c.l.b16 %v1382
        %v1607 = vunpack.c.l.b16 %v1383
        %v1608 = vunpack.c.l.b16 %v1384
        %v1609 = vunpack.c.l.b16 %v1385
        %v1610 = vunpack.c.l.b16 %v1386
        %v1611 = vunpack.c.l.b16 %v1387
        %v1612 = vunpack.c.l.b16 %v1388
        %v1613 = vunpack.c.l.b16 %v1389
        %v1614 = vunpack.c.l.b16 %v1390
        %v1615 = vunpack.c.l.b16 %v1391
        %v1616 = vunpack.c.l.b16 %v1392
        %v1617 = vunpack.c.l.b16 %v1393
        %v1618 = vunpack.c.l.b16 %v1394
        %v1619 = vunpack.c.l.b16 %v1395
        %v1620 = vunpack.c.l.b16 %v1396
        %v1621 = vunpack.c.l.b16 %v1397
        %v1622 = vunpack.c.l.b16 %v1398
        %v1623 = vunpack.c.l.b16 %v1399
        %v1624 = vunpack.c.l.b16 %v1400
        %v1625 = vunpack.c.l.b16 %v1401
        %v1626 = vunpack.c.l.b16 %v1402
        %v1627 = vunpack.c.l.b16 %v1403
        %v1628 = vunpack.c.l.b16 %v1404
        %v1629 = vunpack.c.l.b16 %v1405
        %v1630 = vunpack.c.l.b16 %v1406
        %v1631 = vunpack.c.l.b16 %v1407
        %v1632 = vunpack.c.l.b16 %v1408
        %v1633 = vunpack.c.l.b16 %v1409
        %v1634 = vunpack.c.l.b16 %v1410
        %v1635 = vunpack.c.l.b16 %v1411
        %v1636 = vunpack.c.l.b16 %v1412
        %v1637 = vunpack.c.l.b16 %v1413
        %v1638 = vunpack.c.l.b16 %v1414
        %v1639 = vunpack.c.l.b16 %v1415
        %v1640 = vunpack.c.l.b16 %v1416
        %v1641 = vunpack.c.l.b16 %v1417
        %v1642 = vunpack.c.l.b16 %v1418
        %v1643 = vunpack.c.l.b16 %v1419
        %v1644 = vunpack.c.l.b16 %v1420
        %v1645 = vunpack.c.l.b16 %v1421
        %v1646 = vunpack.c.l.b16 %v1422
        %v1647 = vunpack.c.l.b16 %v1423
        %v1648 = vunpack.c.l.b16 %v1424
        %v1649 = vunpack.c.l.b16 %v1425
        %v1650 = vunpack.c.l.b16 %v1426
        %v1651 = vunpack.c.l.b16 %v1427
        %v1652 = vunpack.c.l.b16 %v1428
        %v1653 = vunpack.c.l.b16 %v1429
        %v1654 = vunpack.c.l.b16 %v1430
        %v1655 = vunpack.c.l.b16 %v1431
        %v1656 = vunpack.c.l.b16 %v1432
        %v1657 = vunpack.c.l.b16 %v1433
        %v1658 = vunpack.c.l.b16 %v1434
        %v1659 = vunpack.c.l.b16 %v1435
        %v1660 = vunpack.c.l.b16 %v1436
        %v1661 = vunpack.c.l.b16 %v1437
        %v1662 = vunpack.c.l.b16 %v1438
        %v1663 = vunpack.c.l.b16 %v1439
        %v1664 = vunpack.c.l.b16 %v1440
        %v1665 = vunpack.c.l.b16 %v1441
        %v1666 = vunpack.c.l.b16 %v1442
        %v1667 = vunpack.c.l.b16 %v1443
        %v1668 = vunpack.c.l.b16 %v1444
        %v1669 = vunpack.c.l.b16 %v1445
        %v1670 = vunpack.c.l.b16 %v1446
        %v1671 = vunpack.c.l.b16 %v1447
        %v1672 = vunpack.c.l.b16 %v1448
        %v1673 = vunpack.c.l.b16 %v1449
        %v1674 = vunpack.c.l.b16 %v1450
        %v1675 = vunpack.c.l.b16 %v1451
        %v1676 = vunpack.c.l.b16 %v1452
        %v1677 = vunpack.c.l.b16 %v1453
        %v1678 = vunpack.c.l.b16 %v1454
        %v1679 = vunpack.c.l.b16 %v1455
        %v1680 = vunpack.c.l.b16 %v1456
        %v1681 = vunpack.c.l.b16 %v1457
        %v1682 = vunpack.c.l.b16 %v1458
        %v1683 = vunpack.c.l.b16 %v1459
        %v1684 = vunpack.c.l.b16 %v1460
        %v1685 = vunpack.c.l.b16 %v1461
        %v1686 = vunpack.c.l.b16 %v1462
        %v1687 = vunpack.c.l.b16 %v1463
        %v1688 = vunpack.c.l.b16 %v1464
        %v1689 = vunpack.c.l.b16 %v1465
        %v1690 = vunpack.c.l.b16 %v1466
        %v1691 = vunpack.c.l.b16 %v1467
        %v1692 = vunpack.c.l.b16 %v1468
        %v1693 = vunpack.c.l.b16 %v1469
        %v1694 = vunpack.c.l.b16 %v1470
        %v1695 = vunpack.c.l.b16 %v1471
        %v1696 = vunpack.c.l.b16 %v1472
        %v1697 = vunpack.c.l.b16 %v1473
        %v1698 = vunpack.c.l.b16 %v1474
        %v1699 = vunpack.c.l.b16 %v1475
        %v1700 = vunpack.c.l.b16 %v1476
        %v1701 = vunpack.c.l.b16 %v1477
        %v1702 = vunpack.c.l.b16 %v1478
        %v1703 = vunpack.c.l.b16 %v1479
        %v1704 = vunpack.c.l.b16 %v1480
        %v1705 = vunpack.c.l.b16 %v1481
        %v1706 = vunpack.c.l.b16 %v1482
        %v1707 = vunpack.c.l.b16 %v1483
        %v1708 = vunpack.c.l.b16 %v1484
        %v1709 = vunpack.c.l.b16 %v1485
        %v1710 = vunpack.c.l.b16 %v1486
        %v1711 = vunpack.c.l.b16 %v1487
        %v1712 = vunpack.c.l.b16 %v1488
        %v1713 = vunpack.c.l.b16 %v1489
        %v1714 = vpack.c.b16 %v1603, %v1602
        %v1715 = vpack.c.b16 %v1605, %v1604
        %v1716 = vpack.c.b16 %v1607, %v1606
        %v1717 = vpack.c.b16 %v1609, %v1608
        %v1718 = vpack.c.b16 %v1611, %v1610
        %v1719 = vpack.c.b16 %v1613, %v1612
        %v1720 = vpack.c.b16 %v1615, %v1614
        %v1721 = vpack.c.b16 %v1617, %v1616
        %v1722 = vpack.c.b16 %v1619, %v1618
        %v1723 = vpack.c.b16 %v1621, %v1620
        %v1724 = vpack.c.b16 %v1623, %v1622
        %v1725 = vpack.c.b16 %v1625, %v1624
        %v1726 = vpack.c.b16 %v1627, %v1626
        %v1727 = vpack.c.b16 %v1629, %v1628
        %v1728 = vpack.c.b16 %v1631, %v1630
        %v1729 = vpack.c.b16 %v1633, %v1632
        %v1730 = vpack.c.b16 %v1635, %v1634
        %v1731 = vpack.c.b16 %v1637, %v1636
        %v1732 = vpack.c.b16 %v1639, %v1638
        %v1733 = vpack.c.b16 %v1641, %v1640
        %v1734 = vpack.c.b16 %v1643, %v1642
        %v1735 = vpack.c.b16 %v1645, %v1644
        %v1736 = vpack.c.b16 %v1647, %v1646
        %v1737 = vpack.c.b16 %v1649, %v1648
        %v1738 = vpack.c.b16 %v1651, %v1650
        %v1739 = vpack.c.b16 %v1653, %v1652
        %v1740 = vpack.c.b16 %v1655, %v1654
        %v1741 = vpack.c.b16 %v1657, %v1656
        %v1742 = vpack.c.b16 %v1659, %v1658
        %v1743 = vpack.c.b16 %v1661, %v1660
        %v1744 = vpack.c.b16 %v1663, %v1662
        %v1745 = vpack.c.b16 %v1665, %v1664
        %v1746 = vpack.c.b16 %v1667, %v1666
        %v1747 = vpack.c.b16 %v1669, %v1668
        %v1748 = vpack.c.b16 %v1671, %v1670
        %v1749 = vpack.c.b16 %v1673, %v1672
        %v1750 = vpack.c.b16 %v1675, %v1674
        %v1751 = vpack.c.b16 %v1677, %v1676
        %v1752 = vpack.c.b16 %v1679, %v1678
        %v1753 = vpack.c.b16 %v1681, %v1680
        %v1754 = vpack.c.b16 %v1683, %v1682
        %v1755 = vpack.c.b16 %v1685, %v1684
        %v1756 = vpack.c.b16 %v1687, %v1686
        %v1757 = vpack.c.b16 %v1689, %v1688
        %v1758 = vpack.c.b16 %v1691, %v1690
        %v1759 = vpack.c.b16 %v1693, %v1692
        %v1760 = vpack.c.b16 %v1695, %v1694
        %v1761 = vpack.c.b16 %v1697, %v1696
        %v1762 = vpack.c.b16 %v1699, %v1698
        %v1763 = vpack.c.b16 %v1701, %v1700
        %v1764 = vpack.c.b16 %v1703, %v1702
        %v1765 = vpack.c.b16 %v1705, %v1704
        %v1766 = vpack.c.b16 %v1707, %v1706
        %v1767 = vpack.c.b16 %v1709, %v1708
        %v1768 = vpack.c.b16 %v1711, %v1710
        %v1769 = vpack.c.b16 %v1713, %v1712
        %1826 = vmatprep.subr.bf16.mxu0 0
        %1827 = vmatpush1.bf16.msra.mxu0 %v1714
        %1828 = vmatprep.subr.bf16.mxu0 0
        %1829 = vmatpush1.bf16.msra.mxu0 %v1715
        %1830 = vmatprep.subr.bf16.mxu0 0
        %1831 = vmatpush1.bf16.msra.mxu0 %v1716
        %1832 = vmatprep.subr.bf16.mxu0 0
        %1833 = vmatpush1.bf16.msra.mxu0 %v1717
        %1834 = vmatprep.subr.bf16.mxu0 0
        %1835 = vmatpush1.bf16.msra.mxu0 %v1718
        %1836 = vmatprep.subr.bf16.mxu0 0
        %1837 = vmatpush1.bf16.msra.mxu0 %v1719
        %1838 = vmatprep.subr.bf16.mxu0 0
        %1839 = vmatpush1.bf16.msra.mxu0 %v1720
        %1840 = vmatprep.subr.bf16.mxu0 0
        %1841 = vmatpush1.bf16.msra.mxu0 %v1721
        %1842 = vmatprep.subr.bf16.mxu0 0
        %1843 = vmatpush1.bf16.msra.mxu0 %v1722
        %1844 = vmatprep.subr.bf16.mxu0 0
        %1845 = vmatpush1.bf16.msra.mxu0 %v1723
        %1846 = vmatprep.subr.bf16.mxu0 0
        %1847 = vmatpush1.bf16.msra.mxu0 %v1724
        %1848 = vmatprep.subr.bf16.mxu0 0
        %1849 = vmatpush1.bf16.msra.mxu0 %v1725
        %1850 = vmatprep.subr.bf16.mxu0 0
        %1851 = vmatpush1.bf16.msra.mxu0 %v1726
        %1852 = vmatprep.subr.bf16.mxu0 0
        %1853 = vmatpush1.bf16.msra.mxu0 %v1727
        %1854 = vmatprep.subr.bf16.mxu0 0
        %1855 = vmatpush1.bf16.msra.mxu0 %v1728
        %1856 = vmatprep.subr.bf16.mxu0 0
        %1857 = vmatpush1.bf16.msra.mxu0 %v1729
        %1858 = vmatprep.mubr.bf16.mxu0 %v1365
        %1859 = vmatmul.mubr.bf16.gmra.mrb[0].mxu0 %v1364
        %v1860 = vpop.f32.mrb[0].mxu0
        %v1861 = vadd.f32 0.0, %v1860
        %v1862 = vpop.f32.mrb[0].mxu0
        %v1863 = vpop.f32.mrb[0].mxu0
        %v1864 = vadd.f32 0.0, %v1863
        %v1865 = vpop.f32.mrb[0].mxu0
        %1866 = vmatprep.mubr.bf16.mxu0 %v1372
        %1867 = vmatmul.mubr.bf16.gmra.mrb[0].mxu0 %v1371
        %v1868 = vpop.f32.mrb[0].mxu0
        %v1869 = vadd.f32 0.0, %v1868
        %v1870 = vpop.f32.mrb[0].mxu0
        %v1871 = vpop.f32.mrb[0].mxu0
        %v1872 = vadd.f32 0.0, %v1871
        %v1873 = vpop.f32.mrb[0].mxu0
        %1874 = vdwg.mxu0
        %1875 = vmatprep.subr.bf16.mxu0 0
        %1876 = vmatpush1.bf16.msra.mxu0 %v1730
        %1877 = vmatprep.subr.bf16.mxu0 0
        %1878 = vmatpush1.bf16.msra.mxu0 %v1731
        %1879 = vmatprep.subr.bf16.mxu0 0
        %1880 = vmatpush1.bf16.msra.mxu0 %v1732
        %1881 = vmatprep.subr.bf16.mxu0 0
        %1882 = vmatpush1.bf16.msra.mxu0 %v1733
        %1883 = vmatprep.subr.bf16.mxu0 0
        %1884 = vmatpush1.bf16.msra.mxu0 %v1734
        %1885 = vmatprep.subr.bf16.mxu0 0
        %1886 = vmatpush1.bf16.msra.mxu0 %v1735
        %1887 = vmatprep.subr.bf16.mxu0 0
        %1888 = vmatpush1.bf16.msra.mxu0 %v1736
        %1889 = vmatprep.subr.bf16.mxu0 0
        %1890 = vmatpush1.bf16.msra.mxu0 %v1737
        %1891 = vmatprep.subr.bf16.mxu0 0
        %1892 = vmatpush1.bf16.msra.mxu0 %v1738
        %1893 = vmatprep.subr.bf16.mxu0 0
        %1894 = vmatpush1.bf16.msra.mxu0 %v1739
        %1895 = vmatprep.subr.bf16.mxu0 0
        %1896 = vmatpush1.bf16.msra.mxu0 %v1740
        %1897 = vmatprep.subr.bf16.mxu0 0
        %1898 = vmatpush1.bf16.msra.mxu0 %v1741
        %1899 = vmatprep.subr.bf16.mxu0 0
        %1900 = vmatpush1.bf16.msra.mxu0 %v1742
        %1901 = vmatprep.subr.bf16.mxu0 0
        %1902 = vmatpush1.bf16.msra.mxu0 %v1743
        %1903 = vmatprep.subr.bf16.mxu0 0
        %1904 = vmatpush1.bf16.msra.mxu0 %v1744
        %1905 = vmatprep.subr.bf16.mxu0 0
        %1906 = vmatpush1.bf16.msra.mxu0 %v1745
        %1907 = vmatprep.mubr.bf16.mxu0 %v1367
        %1908 = vmatmul.mubr.bf16.gmra.mrb[0].mxu0 %v1366
        %v1909 = vpop.f32.mrb[0].mxu0
        %v1910 = vadd.f32 %v1861, %v1909
        %v1911 = vpop.f32.mrb[0].mxu0
        %v1912 = vpop.f32.mrb[0].mxu0
        %v1913 = vadd.f32 %v1864, %v1912
        %v1914 = vpop.f32.mrb[0].mxu0
        %1915 = vmatprep.mubr.bf16.mxu0 %v1374
        %1916 = vmatmul.mubr.bf16.gmra.mrb[0].mxu0 %v1373
        %v1917 = vpop.f32.mrb[0].mxu0
        %v1918 = vadd.f32 %v1869, %v1917
        %v1919 = vpop.f32.mrb[0].mxu0
        %v1920 = vpop.f32.mrb[0].mxu0
        %v1921 = vadd.f32 %v1872, %v1920
        %v1922 = vpop.f32.mrb[0].mxu0
        %1923 = vdwg.mxu0
        %1924 = vmatprep.subr.bf16.mxu0 0
        %1925 = vmatpush1.bf16.msra.mxu0 %v1746
        %1926 = vmatprep.subr.bf16.mxu0 0
        %1927 = vmatpush1.bf16.msra.mxu0 %v1747
        %1928 = vmatprep.subr.bf16.mxu0 0
        %1929 = vmatpush1.bf16.msra.mxu0 %v1748
        %1930 = vmatprep.subr.bf16.mxu0 0
        %1931 = vmatpush1.bf16.msra.mxu0 %v1749
        %1932 = vmatprep.subr.bf16.mxu0 0
        %1933 = vmatpush1.bf16.msra.mxu0 %v1750
        %1934 = vmatprep.subr.bf16.mxu0 0
        %1935 = vmatpush1.bf16.msra.mxu0 %v1751
        %1936 = vmatprep.subr.bf16.mxu0 0
        %1937 = vmatpush1.bf16.msra.mxu0 %v1752
        %1938 = vmatprep.subr.bf16.mxu0 0
        %1939 = vmatpush1.bf16.msra.mxu0 %v1753
        %1940 = vmatprep.subr.bf16.mxu0 0
        %1941 = vmatpush1.bf16.msra.mxu0 %v1754
        %1942 = vmatprep.subr.bf16.mxu0 0
        %1943 = vmatpush1.bf16.msra.mxu0 %v1755
        %1944 = vmatprep.subr.bf16.mxu0 0
        %1945 = vmatpush1.bf16.msra.mxu0 %v1756
        %1946 = vmatprep.subr.bf16.mxu0 0
        %1947 = vmatpush1.bf16.msra.mxu0 %v1757
        %1948 = vmatprep.subr.bf16.mxu0 0
        %1949 = vmatpush1.bf16.msra.mxu0 %v1758
        %1950 = vmatprep.subr.bf16.mxu0 0
        %1951 = vmatpush1.bf16.msra.mxu0 %v1759
        %1952 = vmatprep.subr.bf16.mxu0 0
        %1953 = vmatpush1.bf16.msra.mxu0 %v1760
        %1954 = vmatprep.subr.bf16.mxu0 0
        %1955 = vmatpush1.bf16.msra.mxu0 %v1761
        %1956 = vmatprep.mubr.bf16.mxu0 %v1369
        %1957 = vmatmul.mubr.bf16.gmra.mrb[0].mxu0 %v1368
        %v1958 = vpop.f32.mrb[0].mxu0
        %v1959 = vadd.f32 %v1910, %v1958
        %v1960 = vpop.f32.mrb[0].mxu0
        %v1961 = vpop.f32.mrb[0].mxu0
        %v1962 = vadd.f32 %v1913, %v1961
        %v1963 = vpop.f32.mrb[0].mxu0
        %1964 = vmatprep.mubr.bf16.mxu0 %v1376
        %1965 = vmatmul.mubr.bf16.gmra.mrb[0].mxu0 %v1375
        %v1966 = vpop.f32.mrb[0].mxu0
        %v1967 = vadd.f32 %v1918, %v1966
        %v1968 = vpop.f32.mrb[0].mxu0
        %v1969 = vpop.f32.mrb[0].mxu0
        %v1970 = vadd.f32 %v1921, %v1969
        %v1971 = vpop.f32.mrb[0].mxu0
        %1972 = vdwg.mxu0
        %1973 = vmatprep.subr.bf16.mxu0 0
        %1974 = vmatpush1.bf16.msra.mxu0 %v1762
        %1975 = vmatprep.subr.bf16.mxu0 0
        %1976 = vmatpush1.bf16.msra.mxu0 %v1763
        %1977 = vmatprep.subr.bf16.mxu0 0
        %1978 = vmatpush1.bf16.msra.mxu0 %v1764
        %1979 = vmatprep.subr.bf16.mxu0 0
        %1980 = vmatpush1.bf16.msra.mxu0 %v1765
        %1981 = vmatprep.subr.bf16.mxu0 0
        %1982 = vmatpush1.bf16.msra.mxu0 %v1766
        %1983 = vmatprep.subr.bf16.mxu0 0
        %1984 = vmatpush1.bf16.msra.mxu0 %v1767
        %1985 = vmatprep.subr.bf16.mxu0 0
        %1986 = vmatpush1.bf16.msra.mxu0 %v1768
        %1987 = vmatprep.subr.bf16.mxu0 0
        %1988 = vmatpush1.bf16.msra.mxu0 %v1769
        %1989 = vmatprep.subr.bf16.mxu0 0
        %1990 = vmatpush1.bf16.msra.mxu0 0
        %1991 = vmatprep.subr.bf16.mxu0 0
        %1992 = vmatpush1.bf16.msra.mxu0 0
        %1993 = vmatprep.subr.bf16.mxu0 0
        %1994 = vmatpush1.bf16.msra.mxu0 0
        %1995 = vmatprep.subr.bf16.mxu0 0
        %1996 = vmatpush1.bf16.msra.mxu0 0
        %1997 = vmatprep.subr.bf16.mxu0 0
        %1998 = vmatpush1.bf16.msra.mxu0 0
        %1999 = vmatprep.subr.bf16.mxu0 0
        %2000 = vmatpush1.bf16.msra.mxu0 0
        %2001 = vmatprep.subr.bf16.mxu0 0
        %2002 = vmatpush1.bf16.msra.mxu0 0
        %2003 = vmatprep.subr.bf16.mxu0 0
        %2004 = vmatpush1.bf16.msra.mxu0 0
        %2005 = vmatprep.mubr.bf16.mxu0 0
        %2006 = vmatmul.mubr.bf16.gmra.mrb[0].mxu0 %v1370
        %v2007 = vpop.f32.mrb[0].mxu0
        %v2008 = vadd.f32 %v1959, %v2007
        %v2009 = vpop.f32.mrb[0].mxu0
        %v2010 = vpop.f32.mrb[0].mxu0
        %v2011 = vadd.f32 %v1962, %v2010
        %v2012 = vpop.f32.mrb[0].mxu0
        %2013 = vmatprep.mubr.bf16.mxu0 0
        %2014 = vmatmul.mubr.bf16.gmra.mrb[0].mxu0 %v1377
        %v2015 = vpop.f32.mrb[0].mxu0
        %v2016 = vadd.f32 %v1967, %v2015
        %v2017 = vpop.f32.mrb[0].mxu0
        %v2018 = vpop.f32.mrb[0].mxu0
        %v2019 = vadd.f32 %v1970, %v2018
        %v2020 = vpop.f32.mrb[0].mxu0
        %2021 = vdwg.mxu0
        %v2023 = vlaneseq
        %v2024 = vshrl.u32 %v2023, 7
        %v2025 = vsub.s32 0, %v2024
        %v2026 = vrot.slane %v428, %v2025
        %v2028 = vmul.f32 %v2008, %v2026
        %v2029 = vmul.f32 %v2011, %v2026
        %v2030 = vmul.f32 %v2016, %v2026
        %v2031 = vmul.f32 %v2019, %v2026
        %v2033 = vlaneseq
        %v2034 = vshrl.u32 %v2033, 7
        %v2035 = vsub.s32 0, %v2034
        %v2036 = vrot.slane %v429, %v2035
        %v2038 = vadd.f32 %v2028, %v2036
        %v2039 = vadd.f32 %v2029, %v2036
        %v2040 = vadd.f32 %v2030, %v2036
        %v2041 = vadd.f32 %v2031, %v2036
        %v2042 = vld [vmem:[%s374] sm:$0xf]
        %v2043 = vld [vmem:[%s374 + $0x4] sm:$0xf]
        %v2044 = vld [vmem:[%s374 + $0x8] sm:$0xf]
        %v2045 = vld [vmem:[%s374 + $0xc] sm:$0xf]
        %v2046 = vld [vmem:[#allocation10] sm:$0xf]
        %v2047 = vld [vmem:[#allocation10 + $0x4] sm:$0xf]
        %v2048 = vld [vmem:[#allocation10 + $0x8] sm:$0xf]
        %v2049 = vld [vmem:[#allocation10 + $0xc] sm:$0xf]
        %v2050 = vld [vmem:[#allocation10 + $0x10] sm:$0xf]
        %v2051 = vld [vmem:[#allocation10 + $0x14] sm:$0xf]
        %v2052 = vld [vmem:[#allocation10 + $0x18] sm:$0xf]
        %v2053 = vld [vmem:[#allocation10 + $0x1c] sm:$0xf]
        %v2054 = vld [vmem:[#allocation10 + $0x20] sm:$0xf]
        %v2055 = vld [vmem:[#allocation10 + $0x24] sm:$0xf]
        %v2056 = vld [vmem:[#allocation10 + $0x28] sm:$0xf]
        %v2057 = vld [vmem:[#allocation10 + $0x2c] sm:$0xf]
        %v2058 = vld [vmem:[#allocation10 + $0x30] sm:$0xf]
        %v2059 = vld [vmem:[#allocation10 + $0x34] sm:$0xf]
        %v2060 = vld [vmem:[#allocation10 + $0x38] sm:$0xf]
        %v2061 = vld [vmem:[#allocation10 + $0x3c] sm:$0xf]
        %v2066 = vunpack.c.l.b16 %v2042
        %v2067 = vunpack.c.l.b16 %v2043
        %v2068 = vunpack.c.l.b16 %v2044
        %v2069 = vunpack.c.l.b16 %v2045
        %v2070 = vpack.c.b16 %v2067, %v2066
        %v2071 = vpack.c.b16 %v2069, %v2068
        %v2090 = vunpack.c.l.b16 %v2046
        %v2091 = vunpack.c.l.b16 %v2047
        %v2092 = vunpack.c.l.b16 %v2048
        %v2093 = vunpack.c.l.b16 %v2049
        %v2094 = vunpack.c.l.b16 %v2050
        %v2095 = vunpack.c.l.b16 %v2051
        %v2096 = vunpack.c.l.b16 %v2052
        %v2097 = vunpack.c.l.b16 %v2053
        %v2098 = vunpack.c.l.b16 %v2054
        %v2099 = vunpack.c.l.b16 %v2055
        %v2100 = vunpack.c.l.b16 %v2056
        %v2101 = vunpack.c.l.b16 %v2057
        %v2102 = vunpack.c.l.b16 %v2058
        %v2103 = vunpack.c.l.b16 %v2059
        %v2104 = vunpack.c.l.b16 %v2060
        %v2105 = vunpack.c.l.b16 %v2061
        %v2106 = vpack.c.b16 %v2091, %v2090
        %v2107 = vpack.c.b16 %v2093, %v2092
        %v2108 = vpack.c.b16 %v2095, %v2094
        %v2109 = vpack.c.b16 %v2097, %v2096
        %v2110 = vpack.c.b16 %v2099, %v2098
        %v2111 = vpack.c.b16 %v2101, %v2100
        %v2112 = vpack.c.b16 %v2103, %v2102
        %v2113 = vpack.c.b16 %v2105, %v2104
        %2122 = vmatprep.subr.bf16.mxu0 0
        %2123 = vmatpush1.bf16.msra.mxu0 %v2106
        %2124 = vmatprep.subr.bf16.mxu0 0
        %2125 = vmatpush1.bf16.msra.mxu0 %v2107
        %2126 = vmatprep.subr.bf16.mxu0 0
        %2127 = vmatpush1.bf16.msra.mxu0 %v2108
        %2128 = vmatprep.subr.bf16.mxu0 0
        %2129 = vmatpush1.bf16.msra.mxu0 %v2109
        %2130 = vmatprep.subr.bf16.mxu0 0
        %2131 = vmatpush1.bf16.msra.mxu0 %v2110
        %2132 = vmatprep.subr.bf16.mxu0 0
        %2133 = vmatpush1.bf16.msra.mxu0 %v2111
        %2134 = vmatprep.subr.bf16.mxu0 0
        %2135 = vmatpush1.bf16.msra.mxu0 %v2112
        %2136 = vmatprep.subr.bf16.mxu0 0
        %2137 = vmatpush1.bf16.msra.mxu0 %v2113
        %2138 = vmatprep.subr.bf16.mxu0 0
        %2139 = vmatpush1.bf16.msra.mxu0 0
        %2140 = vmatprep.subr.bf16.mxu0 0
        %2141 = vmatpush1.bf16.msra.mxu0 0
        %2142 = vmatprep.subr.bf16.mxu0 0
        %2143 = vmatpush1.bf16.msra.mxu0 0
        %2144 = vmatprep.subr.bf16.mxu0 0
        %2145 = vmatpush1.bf16.msra.mxu0 0
        %2146 = vmatprep.subr.bf16.mxu0 0
        %2147 = vmatpush1.bf16.msra.mxu0 0
        %2148 = vmatprep.subr.bf16.mxu0 0
        %2149 = vmatpush1.bf16.msra.mxu0 0
        %2150 = vmatprep.subr.bf16.mxu0 0
        %2151 = vmatpush1.bf16.msra.mxu0 0
        %2152 = vmatprep.subr.bf16.mxu0 0
        %2153 = vmatpush1.bf16.msra.mxu0 0
        %2154 = vmatprep.mubr.bf16.mxu0 0
        %2155 = vmatmul.mubr.bf16.gmra.mrb[0].mxu0 %v2070
        %v2156 = vpop.f32.mrb[0].mxu0
        %v2157 = vadd.f32 0.0, %v2156
        %v2158 = vpop.f32.mrb[0].mxu0
        %v2159 = vpop.f32.mrb[0].mxu0
        %v2160 = vadd.f32 0.0, %v2159
        %v2161 = vpop.f32.mrb[0].mxu0
        %2162 = vmatprep.mubr.bf16.mxu0 0
        %2163 = vmatmul.mubr.bf16.gmra.mrb[0].mxu0 %v2071
        %v2164 = vpop.f32.mrb[0].mxu0
        %v2165 = vadd.f32 0.0, %v2164
        %v2166 = vpop.f32.mrb[0].mxu0
        %v2167 = vpop.f32.mrb[0].mxu0
        %v2168 = vadd.f32 0.0, %v2167
        %v2169 = vpop.f32.mrb[0].mxu0
        %2170 = vdwg.mxu0
        %v2171 = vld [vmem:[%s8] sm:$0x1]
        %v2173 = vlaneseq
        %v2174 = vshrl.u32 %v2173, 7
        %v2175 = vsub.s32 0, %v2174
        %v2176 = vrot.slane %v2171, %v2175
        %v2178 = vmul.f32 %v2157, %v2176
        %v2179 = vmul.f32 %v2160, %v2176
        %v2180 = vmul.f32 %v2165, %v2176
        %v2181 = vmul.f32 %v2168, %v2176
        %v2182 = vld [vmem:[%s9] sm:$0x1]
        %v2184 = vlaneseq
        %v2185 = vshrl.u32 %v2184, 7
        %v2186 = vsub.s32 0, %v2185
        %v2187 = vrot.slane %v2182, %v2186
        %v2189 = vadd.f32 %v2178, %v2187
        %v2190 = vadd.f32 %v2179, %v2187
        %v2191 = vadd.f32 %v2180, %v2187
        %v2192 = vadd.f32 %v2181, %v2187
        %v2193 = vadd.f32 %v2038, %v2189
        %v2194 = vadd.f32 %v2039, %v2190
        %v2195 = vadd.f32 %v2040, %v2191
        %v2196 = vadd.f32 %v2041, %v2192
        %v2197 = vmax.f32 %v2193, 0.0
        %v2198 = vmax.f32 %v2194, 0.0
        %v2199 = vmax.f32 %v2195, 0.0
        %v2200 = vmax.f32 %v2196, 0.0
        %2201 = vst [vmem:[%s422] sm:$0xff] %v2197
        %2202 = vst [vmem:[%s422 + $0x8] sm:$0xff] %v2198
        %2203 = vst [vmem:[%s422 + $0x10] sm:$0xff] %v2199
        %2204 = vst [vmem:[%s422 + $0x18] sm:$0xff] %v2200
        %s2205 = sand.u32 %s252, 1
        %s2206 = scalar_lea.sflag [#allocation6], %s2205
        %s2207 = sand.u32 %s252, 1
        %s2208 = smul.addr %s2207, 32
        %s2209 = scalar_lea.vmem [#allocation12], %s2208
        // Predicated region
        $region77: #{tpu_custom_call.1} parent=59 // pred_check
          %p2210 = pneg %p262
        $region78: #{tpu_custom_call.1} parent=59 // pred_check_branch
          %2212 = sbr.rel (%p2210) target = $region80
        $region79: #{tpu_custom_call.1} parent=59 // pred_region
          %s2213 = smul.u32 2, %s29
          %s2215 = ssub.s32 512, 512
          %2216 = vsyncadd %s2206, %s2215
          %s2217 = smul.addr %s2213, 2
          %s2218 = smul.addr %s2217, 128
          %s2219 = scalar_lea.hbm %s10, %s2218
          %s2220 = sshll.u32 %s2209, 4
          %s2221 = int_to_ptr.vmem [resolvable:$true] %s2220
          %2226 = dma.vmem_to_hbm [thread:$0]  %s2221, 512, %s2219, %s2206, 128, 128, 8
        $region80: #{tpu_custom_call.1} parent=59 // pred_fallthru
          _
      $region60: #{tpu_custom_call.1} parent=5 // pred_fallthru
        _
      %p2227 = scmp.le.s32.totalorder 2, %s24
      // Predicated region
      $region81: #{tpu_custom_call.1} parent=5 // pred_check
        %p2228 = pneg %p2227
      $region82: #{tpu_custom_call.1} parent=5 // pred_check_branch
        %2230 = sbr.rel (%p2228) target = $region84
      $region83: #{tpu_custom_call.1} parent=5 // pred_region
        %s2231 = ssub.s32 %s24, 2
        // Predicated region
        $region85: #{tpu_custom_call.1} parent=83 // pred_check
          %p2232 = pneg %p268
        $region86: #{tpu_custom_call.1} parent=83 // pred_check_branch
          %2234 = sbr.rel (%p2232) target = $region88
        $region87: #{tpu_custom_call.1} parent=83 // pred_region
          %s2235 = sand.u32 %s253, 1
          %s2236 = scalar_lea.sflag [#allocation6], %s2235
          %s2237 = sand.u32 %s253, 1
          %s2238 = smul.addr %s2237, 32
          %s2239 = scalar_lea.vmem [#allocation12], %s2238
          %2240 = dma.done %s2236, 512
        $region88: #{tpu_custom_call.1} parent=83 // pred_fallthru
          _
      $region84: #{tpu_custom_call.1} parent=5 // pred_fallthru
        _
    $region6: #{tpu_custom_call.1} parent=1 // loop_footer
      %s28 = sadd.s32 1, %s24
    $region7: #{tpu_custom_call.1} parent=1 // loop_footer_branch
      %23 = sbr.rel target = $region3
    $region8: #{tpu_custom_call.1} parent=1 // loop_exit
      _
    %2241 = vsyncpa [#allocation5], 1
    %s2242 = scalar_lea.sflag [#allocation5], 1
    %2243 = vsyncpa %s2242, 1
    %2244 = vsyncpa [#allocation8], 1
    %2245 = vsyncpa [#allocation11], 1
    %2246 = vsyncpa [#allocation6], 1
    %s2247 = scalar_lea.sflag [#allocation6], 1
    %2248 = vsyncpa %s2247, 1

</llo_original>
